<compile_context>
chip_gen: v5e
topology: v5e:2x2
jax: 0.10.0
libtpu: 0.0.40
codegen_flags: <defaults>
</compile_context>

<pallas_src>
import functools

import jax
import jax.numpy as jnp
from jax.experimental import pallas as pl
from jax.experimental.pallas import tpu as pltpu

FOCAL_ALPHA = 0.25
_VMEM_LIMIT_BYTES = 48 * 1024 * 1024     # <= v7x's 64 MiB physical VMEM; fine on v5e/v6e (128 MiB)
_QTILE_INPUT_BUDGET = 28 * 1024 * 1024   # budget for double-buffered query-axis input blocks
_QTILE_MAX = 1024                        # measured roofline plateau at 512-1024 rows


def _round_up(n, m):
    return ((n + m - 1) // m) * m


# ----------------------------------------------------------------------------
# in-kernel helpers
# ----------------------------------------------------------------------------
def _focal_terms(x, t, alpha):
    """Elementwise sigmoid focal loss (gamma=2), numerically stable, exact sigmoid."""
    e = jnp.exp(-jnp.abs(x))
    prob = jnp.where(x >= 0.0, 1.0, e) / (1.0 + e)            # sigmoid(x), stable & exact
    ce = jnp.maximum(x, 0.0) - x * t + jnp.log(1.0 + e)       # stable BCE-with-logits
    p_t = prob * t + (1.0 - prob) * (1.0 - t)
    q = 1.0 - p_t
    loss = ce * q * q                                         # gamma = 2
    if alpha >= 0:
        loss = (alpha * t + (1.0 - alpha) * (1.0 - t)) * loss
    return loss


# ----------------------------------------------------------------------------
# fused loss kernel: grid = (heads, query-tiles)
# ----------------------------------------------------------------------------
def _fused_loss_kernel(logits_ref, tgt_ref, id_ref, lens_ref,
                       sbox_ref, tbox_ref, bmask_ref,
                       out_ref, acc_ref, *, alpha, q_valid):
    qi = pl.program_id(1)
    nq = pl.num_programs(1)

    @pl.when(qi == 0)
    def _init():
        acc_ref[...] = jnp.zeros_like(acc_ref)

    x = logits_ref[...]                       # [B, tq, C]   f32
    z = id_ref[...]                           # [B, tq, Nid] f32
    tgt = tgt_ref[...]                        # [B, tq, 2]   int32 (class, track-id)
    B, tq, C = x.shape
    Nid = z.shape[-1]

    tcls = tgt[:, :, 0:1]                     # value C == no-object / unmatched
    tid = tgt[:, :, 1:2]                      # value -1 == no valid track id
    idv = (tid >= 0).astype(jnp.float32)      # validity derived in-kernel (no idv input)

    # mask rows added by Q padding (wrapper pads Q up to a multiple of tq)
    q_global = qi * tq + jax.lax.broadcasted_iota(jnp.int32, (B, tq, 1), 1)
    qmask = (q_global < q_valid).astype(jnp.float32)

    # ----- classification focal loss + class accuracy + cardinality -----
    lane_c = jax.lax.broadcasted_iota(jnp.int32, x.shape, 2)
    onehot = (tcls == lane_c).astype(jnp.float32)             # unmatched -> all-zero one-hot
    cls_row = jnp.sum(_focal_terms(x, onehot, alpha), axis=-1, keepdims=True)   # [B, tq, 1]

    # argmax with first-maximal-index tie-break (matches torch.argmax)
    maxv = jnp.max(x, axis=-1, keepdims=True)
    amax = jnp.min(jnp.where(x == maxv, lane_c, C), axis=-1, keepdims=True)     # [B, tq, 1]
    correct_cls = (amax == tcls).astype(jnp.float32)
    not_empty = (amax != C - 1).astype(jnp.float32)           # reuse argmax: no extra XLU max

    # ----- track-id focal loss + id accuracy -----
    lane_i = jax.lax.broadcasted_iota(jnp.int32, z.shape, 2)
    onehot_id = (tid == lane_i).astype(jnp.float32)
    id_row = jnp.sum(_focal_terms(z, onehot_id, alpha), axis=-1, keepdims=True)  # [B, tq, 1]

    maxv_i = jnp.max(z, axis=-1, keepdims=True)
    amax_i = jnp.min(jnp.where(z == maxv_i, lane_i, Nid), axis=-1, keepdims=True)
    correct_id = (amax_i == tid).astype(jnp.float32) * idv

    # ----- lane-pack the six per-row stats: one sublane reduce, one accumulator -----
    lane8 = jax.lax.broadcasted_iota(jnp.int32, (B, tq, 8), 2)
    packed = jnp.where(lane8 == 0, cls_row, 0.0)
    packed = jnp.where(lane8 == 1, correct_cls, packed)
    packed = jnp.where(lane8 == 2, id_row * idv, packed)
    packed = jnp.where(lane8 == 3, idv, packed)
    packed = jnp.where(lane8 == 4, correct_id, packed)
    packed = jnp.where(lane8 == 5, not_empty, packed)
    acc_ref[...] += jnp.sum(packed * qmask, axis=1)           # [B, 8]

    # ----- finalize per head: box losses + normalization + one lane-padded output row -----
    @pl.when(qi == nq - 1)
    def _finalize():
        lens = lens_ref[...]                                  # [B, 1] f32
        acc = acc_ref[...]                                    # [B, 8]
        num_boxes = jnp.maximum(jnp.sum(lens, axis=0, keepdims=True), 1.0)       # (1, 1)

        tot = jnp.sum(acc, axis=0, keepdims=True)             # [1, 8]
        cls_sum, ccls_sum = tot[:, 0:1], tot[:, 1:2]
        id_sum, cid_sum = tot[:, 2:3], tot[:, 4:5]
        n_ids = jnp.maximum(tot[:, 3:4], 1.0)
        card_err = (jnp.sum(jnp.abs(acc[:, 5:6] - lens), axis=0, keepdims=True)
                    / lens.shape[0])

        s = sbox_ref[...]                                     # [4, Np] rows = (cx, cy, w, h)
        t = tbox_ref[...]
        m = bmask_ref[...]                                    # [1, Np]

        l1_sum = jnp.sum(jnp.abs(s - t) * m, keepdims=True)   # (1, 1)

        scx, scy, sw, sh = s[0:1, :], s[1:2, :], s[2:3, :], s[3:4, :]
        tcx, tcy, tw, th = t[0:1, :], t[1:2, :], t[2:3, :], t[3:4, :]
        sx1, sx2 = scx - 0.5 * sw, scx + 0.5 * sw
        sy1, sy2 = scy - 0.5 * sh, scy + 0.5 * sh
        tx1, tx2 = tcx - 0.5 * tw, tcx + 0.5 * tw
        ty1, ty2 = tcy - 0.5 * th, tcy + 0.5 * th

        area_s = (sx2 - sx1) * (sy2 - sy1)
        area_t = (tx2 - tx1) * (ty2 - ty1)
        iw = jnp.maximum(jnp.minimum(sx2, tx2) - jnp.maximum(sx1, tx1), 0.0)
        ih = jnp.maximum(jnp.minimum(sy2, ty2) - jnp.maximum(sy1, ty1), 0.0)
        inter = iw * ih
        union = area_s + area_t - inter
        iou = inter / jnp.maximum(union, 1e-7)                # safe denom: padded pairs -> 0
        ew = jnp.maximum(sx2, tx2) - jnp.minimum(sx1, tx1)
        eh = jnp.maximum(sy2, ty2) - jnp.minimum(sy1, ty1)
        area_c = ew * eh
        giou = iou - (area_c - union) / jnp.maximum(area_c, 1e-7)
        giou_sum = jnp.sum((1.0 - giou) * m, keepdims=True)   # (1, 1)

        loss_ce = cls_sum / num_boxes
        class_error = 100.0 - 100.0 * ccls_sum / num_boxes
        loss_ids = id_sum / n_ids
        id_class_error = 100.0 - 100.0 * cid_sum / n_ids
        loss_bbox = l1_sum / num_boxes
        loss_giou = giou_sum / num_boxes

        lane = jax.lax.broadcasted_iota(jnp.int32, out_ref.shape, 1)   # (8, 128)
        vec = jnp.where(lane == 0, loss_ce, 0.0)
        vec = jnp.where(lane == 1, class_error, vec)
        vec = jnp.where(lane == 2, card_err, vec)
        vec = jnp.where(lane == 3, loss_ids, vec)
        vec = jnp.where(lane == 4, id_class_error, vec)
        vec = jnp.where(lane == 5, loss_bbox, vec)
        vec = jnp.where(lane == 6, loss_giou, vec)
        out_ref[...] = vec


# ----------------------------------------------------------------------------
# budget-driven query tile
# ----------------------------------------------------------------------------
def _pick_q_tile(Q, B, C, Nid):
    """Largest multiple-of-8 query tile whose double-buffered, lane-padded query-axis
    input blocks fit the VMEM input budget; Q is padded up to a multiple of the tile."""
    lane = lambda n: _round_up(n, 128)
    bytes_per_row = B * (lane(C) + lane(Nid) + lane(2)) * 4 * 2   # f32/i32, double-buffered
    tq = (_QTILE_INPUT_BUDGET // max(bytes_per_row, 1)) // 8 * 8
    tq = max(8, min(tq, _QTILE_MAX, _round_up(Q, 8)))
    q_pad = _round_up(_round_up(Q, 8), tq)
    return tq, q_pad


def _fused_criterion(pred_logits, tgt_packed, id_embeds, lens, sbox, tbox, bmask,
                     *, q_valid, tq, alpha=FOCAL_ALPHA):
    H, B, Qp, C = pred_logits.shape
    Nid = id_embeds.shape[-1]
    Np = sbox.shape[-1]
    grid = (H, Qp // tq)

    kernel = functools.partial(_fused_loss_kernel, alpha=alpha, q_valid=q_valid)
    return pl.pallas_call(
        kernel,
        grid_spec=pltpu.PrefetchScalarGridSpec(
            num_scalar_prefetch=0,
            grid=grid,
            in_specs=[
                pl.BlockSpec((pl.Squeezed(), B, tq, C), lambda h, i: (h, 0, i, 0)),
                pl.BlockSpec((pl.Squeezed(), B, tq, 2), lambda h, i: (h, 0, i, 0)),
                pl.BlockSpec((pl.Squeezed(), B, tq, Nid), lambda h, i: (h, 0, i, 0)),
                pl.BlockSpec((B, 1), lambda h, i: (0, 0)),                 # target counts
                pl.BlockSpec((pl.Squeezed(), 4, Np), lambda h, i: (h, 0, 0)),   # src boxes
                pl.BlockSpec((pl.Squeezed(), 4, Np), lambda h, i: (h, 0, 0)),   # tgt boxes
                pl.BlockSpec((pl.Squeezed(), 1, Np), lambda h, i: (h, 0, 0)),   # pair mask
            ],
            out_specs=pl.BlockSpec((pl.Squeezed(), 8, 128), lambda h, i: (h, 0, 0)),
            scratch_shapes=[pltpu.VMEM((B, 8), jnp.float32)],   # lane-packed accumulators
        ),
        out_shape=jax.ShapeDtypeStruct((H, 8, 128), jnp.float32),
        compiler_params=pltpu.CompilerParams(
            dimension_semantics=("parallel", "arbitrary"),      # heads across TCs (v7x)
            vmem_limit_bytes=_VMEM_LIMIT_BYTES,
        ),
    )(pred_logits, tgt_packed, id_embeds, lens, sbox, tbox, bmask)


# ----------------------------------------------------------------------------
# per-head target construction (cheap JAX glue, vmapped over heads)
# ----------------------------------------------------------------------------
def _build_head_targets(pred_boxes_h, src_idx_h, tgt_idx_h, *, labels, boxes, ids,
                        num_targets, q_pad, num_classes):
    B, T = labels.shape
    flat_b = jnp.repeat(jnp.arange(B), T)
    src_flat = src_idx_h.reshape(-1).astype(jnp.int32)
    tgt_flat = tgt_idx_h.reshape(-1).astype(jnp.int32)
    valid = (jnp.arange(T)[None, :] < num_targets[:, None]).reshape(-1)

    labels_o = labels[flat_b, tgt_flat]
    ids_o = ids[flat_b, tgt_flat]
    tboxes_o = boxes[flat_b, tgt_flat]
    sboxes_o = pred_boxes_h[flat_b, src_flat]

    rows = jnp.where(valid, flat_b, B)                        # invalid -> dropped
    target_classes = jnp.full((B, q_pad), num_classes, jnp.int32)
    target_classes = target_classes.at[rows, src_flat].set(labels_o.astype(jnp.int32),
                                                           mode='drop')

    id_ok = valid & (ids_o > -1)
    rows_id = jnp.where(id_ok, flat_b, B)
    target_ids = jnp.full((B, q_pad), -1, jnp.int32)
    target_ids = target_ids.at[rows_id, src_flat].set(ids_o.astype(jnp.int32), mode='drop')

    tgt_packed = jnp.stack([target_classes, target_ids], axis=-1)          # [B, Qp, 2]

    n_pairs = B * T
    n_pad = _round_up(n_pairs, 128)
    sbox = jnp.zeros((4, n_pad), jnp.float32).at[:, :n_pairs].set(sboxes_o.T)
    tbox = jnp.zeros((4, n_pad), jnp.float32).at[:, :n_pairs].set(tboxes_o.T)
    bmask = jnp.zeros((1, n_pad), jnp.float32).at[0, :n_pairs].set(valid.astype(jnp.float32))
    return tgt_packed, sbox, tbox, bmask


# ----------------------------------------------------------------------------
# SetCriterion.forward (losses = ['labels', 'cardinality', 'boxes'])
# Head 0 = main outputs, heads 1..H-1 = aux_outputs (suffix '_i', no class_error).
# ----------------------------------------------------------------------------
@jax.jit
def set_criterion_forward(pred_logits, pred_boxes, id_embeds,
                          labels, boxes, ids, num_targets,
                          src_idx, tgt_idx):
    H, B, Q, C = pred_logits.shape
    Nid = id_embeds.shape[-1]

    tq, q_pad = _pick_q_tile(Q, B, C, Nid)
    if q_pad > Q:
        padw = ((0, 0), (0, 0), (0, q_pad - Q), (0, 0))
        pred_logits_p = jnp.pad(pred_logits, padw)
        id_embeds_p = jnp.pad(id_embeds, padw)
    else:
        pred_logits_p, id_embeds_p = pred_logits, id_embeds

    build = functools.partial(_build_head_targets, labels=labels, boxes=boxes, ids=ids,
                              num_targets=num_targets, q_pad=q_pad, num_classes=C)
    tgt_packed, sbox, tbox, bmask = jax.vmap(build)(pred_boxes, src_idx, tgt_idx)

    lens = num_targets.astype(jnp.float32).reshape(B, 1)

    out = _fused_criterion(pred_logits_p, tgt_packed, id_embeds_p, lens,
                           sbox, tbox, bmask, q_valid=Q, tq=tq)
    vals = out[:, 0, :]                                       # [H, 128]

    names = ['loss_ce', 'class_error', 'cardinality_error', 'loss_ids',
             'id_class_error', 'loss_bbox', 'loss_giou']
    losses = {n: vals[0, j] for j, n in enumerate(names)}
    for h in range(1, H):
        for j, n in enumerate(names):
            if n == 'class_error':          # aux heads use log=False for 'labels'
                continue
            losses[f'{n}_{h - 1}'] = vals[h, j]
    return losses


# ----------------------------------------------------------------------------
if __name__ == "__main__":
    key = jax.random.PRNGKey(0)
    H, B, Q, C, Nid, T = 3, 2, 8, 4, 6, 3        # main head + 2 aux heads, one kernel launch
    ks = jax.random.split(key, 6)

    # model outputs (stacked heads: head 0 = main, 1.. = aux)
    pred_logits = jax.random.normal(ks[0], (H, B, Q, C), dtype=jnp.float32)
    pred_boxes = jax.nn.sigmoid(jax.random.normal(ks[1], (H, B, Q, 4), dtype=jnp.float32))
    id_embeds = jax.random.normal(ks[2], (H, B, Q, Nid), dtype=jnp.float32)

    # dense padded targets
    labels = jax.random.randint(ks[3], (B, T), 0, C, dtype=jnp.int32)
    boxes = jax.nn.sigmoid(jax.random.normal(ks[4], (B, T, 4), dtype=jnp.float32))
    ids = jax.random.randint(ks[5], (B, T), 0, Nid, dtype=jnp.int32)
    ids = ids.at[0, 2].set(-1)                   # one invalid track id
    num_targets = jnp.array([3, 2], dtype=jnp.int32)

    # deterministic (identity) matching per head in place of the Hungarian matcher
    src_idx = jnp.tile(jnp.arange(T, dtype=jnp.int32)[None, None, :], (H, B, 1))
    tgt_idx = jnp.tile(jnp.arange(T, dtype=jnp.int32)[None, None, :], (H, B, 1))

    losses = set_criterion_forward(pred_logits, pred_boxes, id_embeds,
                                   labels, boxes, ids, num_targets,
                                   src_idx, tgt_idx)
    losses = jax.block_until_ready(losses)
    print("KERNEL_OK")
</pallas_src>

<mosaic_0001>
module attributes {stable_mosaic.version = 11 : i64} {
  func.func @_fused_loss_kernel(%arg0: i32, %arg1: i32, %arg2: memref<1x2x8x4xf32, #tpu.memory_space<vmem>>, %arg3: memref<1x2x8x2xi32, #tpu.memory_space<vmem>>, %arg4: memref<1x2x8x6xf32, #tpu.memory_space<vmem>>, %arg5: memref<2x1xf32, #tpu.memory_space<vmem>>, %arg6: memref<1x4x128xf32, #tpu.memory_space<vmem>>, %arg7: memref<1x4x128xf32, #tpu.memory_space<vmem>>, %arg8: memref<1x1x128xf32, #tpu.memory_space<vmem>>, %arg9: memref<1x8x128xf32, #tpu.memory_space<vmem>>, %arg10: memref<2x8xf32, #tpu.memory_space<vmem>>) attributes {dimension_semantics = [#tpu.dimension_semantics<parallel>, #tpu.dimension_semantics<arbitrary>], iteration_bounds = array<i64: 3, 1>, scalar_prefetch = 0 : i64, scratch_operands = 1 : i64, tpu.core_type = #tpu.core_type<tc>, window_params = [{transform_indices = @transform_0, window_bounds = array<i64: 1, 2, 8, 4>}, {transform_indices = @transform_1, window_bounds = array<i64: 1, 2, 8, 2>}, {transform_indices = @transform_2, window_bounds = array<i64: 1, 2, 8, 6>}, {pipeline_mode = #tpu.pipeline_mode<synchronous>, transform_indices = @transform_3, window_bounds = array<i64: 2, 1>}, {transform_indices = @transform_4, window_bounds = array<i64: 1, 4, 128>}, {transform_indices = @transform_5, window_bounds = array<i64: 1, 4, 128>}, {transform_indices = @transform_6, window_bounds = array<i64: 1, 1, 128>}, {transform_indices = @transform_7, window_bounds = array<i64: 1, 8, 128>}]} {
    %c0_i32 = arith.constant 0 : i32
    %0 = arith.cmpi eq, %arg1, %c0_i32 : i32
    %1 = arith.extui %0 : i1 to i32
    %c0_i32_0 = arith.constant 0 : i32
    %2 = arith.cmpi ne, %1, %c0_i32_0 : i32
    scf.if %2 {
      %cst_54 = arith.constant 0.000000e+00 : f32
      %182 = vector.broadcast %cst_54 : f32 to vector<2x8xf32>
      %c0_55 = arith.constant 0 : index
      %c0_56 = arith.constant 0 : index
      %183 = vector.load %arg10[%c0_55, %c0_56] : memref<2x8xf32, #tpu.memory_space<vmem>>, vector<2x8xf32>
      tpu.vector_store %arg10[%c0_55, %c0_56], %182 {strides = array<i32>} : memref<2x8xf32, #tpu.memory_space<vmem>>, vector<2x8xf32>,
    } else {
    }
    %c0 = arith.constant 0 : index
    %c0_1 = arith.constant 0 : index
    %c0_2 = arith.constant 0 : index
    %c0_3 = arith.constant 0 : index
    %3 = vector.load %arg2[%c0, %c0_1, %c0_2, %c0_3] : memref<1x2x8x4xf32, #tpu.memory_space<vmem>>, vector<1x2x8x4xf32>
    %4 = vector.shape_cast %3 : vector<1x2x8x4xf32> to vector<2x8x4xf32>
    %c0_4 = arith.constant 0 : index
    %c0_5 = arith.constant 0 : index
    %c0_6 = arith.constant 0 : index
    %c0_7 = arith.constant 0 : index
    %5 = vector.load %arg4[%c0_4, %c0_5, %c0_6, %c0_7] : memref<1x2x8x6xf32, #tpu.memory_space<vmem>>, vector<1x2x8x6xf32>
    %6 = vector.shape_cast %5 : vector<1x2x8x6xf32> to vector<2x8x6xf32>
    %c0_8 = arith.constant 0 : index
    %c0_9 = arith.constant 0 : index
    %c0_10 = arith.constant 0 : index
    %c0_11 = arith.constant 0 : index
    %7 = vector.load %arg3[%c0_8, %c0_9, %c0_10, %c0_11] : memref<1x2x8x2xi32, #tpu.memory_space<vmem>>, vector<1x2x8x2xi32>
    %8 = vector.shape_cast %7 : vector<1x2x8x2xi32> to vector<2x8x2xi32>
    %9 = vector.extract_strided_slice %8 {offsets = [0, 0, 0], sizes = [2, 8, 1], strides = [1, 1, 1]} : vector<2x8x2xi32> to vector<2x8x1xi32>
    %10 = vector.extract_strided_slice %8 {offsets = [0, 0, 1], sizes = [2, 8, 1], strides = [1, 1, 1]} : vector<2x8x2xi32> to vector<2x8x1xi32>
    %c0_i32_12 = arith.constant 0 : i32
    %11 = vector.broadcast %c0_i32_12 : i32 to vector<2x8x1xi32>
    %12 = arith.cmpi sge, %10, %11 : vector<2x8x1xi32>
    %13 = arith.extui %12 : vector<2x8x1xi1> to vector<2x8x1xi32>
    %14 = arith.sitofp %13 : vector<2x8x1xi32> to vector<2x8x1xf32>
    %c8_i32 = arith.constant 8 : i32
    %15 = arith.muli %arg1, %c8_i32 : i32
    %16 = tpu.iota {dimensions = array<i32: 1>} : vector<2x8x1xi32>
    %17 = vector.broadcast %15 : i32 to vector<2x8x1xi32>
    %18 = arith.addi %17, %16 : vector<2x8x1xi32>
    %c8_i32_13 = arith.constant 8 : i32
    %19 = vector.broadcast %c8_i32_13 : i32 to vector<2x8x1xi32>
    %20 = arith.cmpi slt, %18, %19 : vector<2x8x1xi32>
    %21 = arith.extui %20 : vector<2x8x1xi1> to vector<2x8x1xi32>
    %22 = arith.sitofp %21 : vector<2x8x1xi32> to vector<2x8x1xf32>
    %23 = tpu.iota {dimensions = array<i32: 2>} : vector<2x8x4xi32>
    %24 = vector.broadcast %9 : vector<2x8x1xi32> to vector<2x8x4xi32>
    %25 = arith.cmpi eq, %24, %23 : vector<2x8x4xi32>
    %26 = arith.extui %25 : vector<2x8x4xi1> to vector<2x8x4xi32>
    %27 = arith.sitofp %26 : vector<2x8x4xi32> to vector<2x8x4xf32>
    %28 = math.absf %4 : vector<2x8x4xf32>
    %cst = arith.constant 0.000000e+00 : f32
    %29 = vector.broadcast %cst : f32 to vector<2x8x4xf32>
    %30 = arith.subf %29, %28 : vector<2x8x4xf32>
    %31 = math.exp %30 : vector<2x8x4xf32>
    %cst_14 = arith.constant 0.000000e+00 : f32
    %32 = vector.broadcast %cst_14 : f32 to vector<2x8x4xf32>
    %33 = arith.cmpf oge, %4, %32 : vector<2x8x4xf32>
    %cst_15 = arith.constant 1.000000e+00 : f32
    %34 = vector.broadcast %cst_15 : f32 to vector<2x8x4xf32>
    %35 = arith.select %33, %34, %31 : vector<2x8x4xi1>, vector<2x8x4xf32>
    %cst_16 = arith.constant 1.000000e+00 : f32
    %36 = vector.broadcast %cst_16 : f32 to vector<2x8x4xf32>
    %37 = arith.addf %36, %31 : vector<2x8x4xf32>
    %38 = arith.divf %35, %37 : vector<2x8x4xf32>
    %cst_17 = arith.constant 0.000000e+00 : f32
    %39 = vector.broadcast %cst_17 : f32 to vector<2x8x4xf32>
    %40 = arith.maximumf %4, %39 : vector<2x8x4xf32>
    %41 = arith.mulf %4, %27 : vector<2x8x4xf32>
    %42 = arith.subf %40, %41 : vector<2x8x4xf32>
    %cst_18 = arith.constant 1.000000e+00 : f32
    %43 = vector.broadcast %cst_18 : f32 to vector<2x8x4xf32>
    %44 = arith.addf %43, %31 : vector<2x8x4xf32>
    %45 = math.log %44 : vector<2x8x4xf32>
    %46 = arith.addf %42, %45 : vector<2x8x4xf32>
    %47 = arith.mulf %38, %27 : vector<2x8x4xf32>
    %cst_19 = arith.constant 1.000000e+00 : f32
    %48 = vector.broadcast %cst_19 : f32 to vector<2x8x4xf32>
    %49 = arith.subf %48, %38 : vector<2x8x4xf32>
    %cst_20 = arith.constant 1.000000e+00 : f32
    %50 = vector.broadcast %cst_20 : f32 to vector<2x8x4xf32>
    %51 = arith.subf %50, %27 : vector<2x8x4xf32>
    %52 = arith.mulf %49, %51 : vector<2x8x4xf32>
    %53 = arith.addf %47, %52 : vector<2x8x4xf32>
    %cst_21 = arith.constant 1.000000e+00 : f32
    %54 = vector.broadcast %cst_21 : f32 to vector<2x8x4xf32>
    %55 = arith.subf %54, %53 : vector<2x8x4xf32>
    %56 = arith.mulf %46, %55 : vector<2x8x4xf32>
    %57 = arith.mulf %56, %55 : vector<2x8x4xf32>
    %cst_22 = arith.constant 2.500000e-01 : f32
    %58 = vector.broadcast %cst_22 : f32 to vector<2x8x4xf32>
    %59 = arith.mulf %58, %27 : vector<2x8x4xf32>
    %cst_23 = arith.constant 1.000000e+00 : f32
    %60 = vector.broadcast %cst_23 : f32 to vector<2x8x4xf32>
    %61 = arith.subf %60, %27 : vector<2x8x4xf32>
    %cst_24 = arith.constant 7.500000e-01 : f32
    %62 = vector.broadcast %cst_24 : f32 to vector<2x8x4xf32>
    %63 = arith.mulf %62, %61 : vector<2x8x4xf32>
    %64 = arith.addf %59, %63 : vector<2x8x4xf32>
    %65 = arith.mulf %64, %57 : vector<2x8x4xf32>
    %cst_25 = arith.constant dense<0.000000e+00> : vector<2x8xf32>
    %66 = vector.multi_reduction <add>, %65, %cst_25 [2] : vector<2x8x4xf32> to vector<2x8xf32>
    %67 = vector.shape_cast %66 : vector<2x8xf32> to vector<2x8x1xf32>
    %cst_26 = arith.constant dense<0xFF800000> : vector<2x8xf32>
    %68 = vector.multi_reduction <maximumf>, %4, %cst_26 [2] : vector<2x8x4xf32> to vector<2x8xf32>
    %69 = vector.shape_cast %68 : vector<2x8xf32> to vector<2x8x1xf32>
    %70 = vector.broadcast %69 : vector<2x8x1xf32> to vector<2x8x4xf32>
    %71 = arith.cmpf oeq, %4, %70 : vector<2x8x4xf32>
    %c4_i32 = arith.constant 4 : i32
    %72 = vector.broadcast %c4_i32 : i32 to vector<2x8x4xi32>
    %73 = arith.select %71, %23, %72 : vector<2x8x4xi1>, vector<2x8x4xi32>
    %cst_27 = arith.constant dense<2147483647> : vector<2x8xi32>
    %74 = vector.multi_reduction <minsi>, %73, %cst_27 [2] : vector<2x8x4xi32> to vector<2x8xi32>
    %75 = vector.shape_cast %74 : vector<2x8xi32> to vector<2x8x1xi32>
    %76 = arith.cmpi eq, %75, %9 : vector<2x8x1xi32>
    %77 = arith.extui %76 : vector<2x8x1xi1> to vector<2x8x1xi32>
    %78 = arith.sitofp %77 : vector<2x8x1xi32> to vector<2x8x1xf32>
    %c3_i32 = arith.constant 3 : i32
    %79 = vector.broadcast %c3_i32 : i32 to vector<2x8x1xi32>
    %80 = arith.cmpi ne, %75, %79 : vector<2x8x1xi32>
    %81 = arith.extui %80 : vector<2x8x1xi1> to vector<2x8x1xi32>
    %82 = arith.sitofp %81 : vector<2x8x1xi32> to vector<2x8x1xf32>
    %83 = tpu.iota {dimensions = array<i32: 2>} : vector<2x8x6xi32>
    %84 = vector.broadcast %10 : vector<2x8x1xi32> to vector<2x8x6xi32>
    %85 = arith.cmpi eq, %84, %83 : vector<2x8x6xi32>
    %86 = arith.extui %85 : vector<2x8x6xi1> to vector<2x8x6xi32>
    %87 = arith.sitofp %86 : vector<2x8x6xi32> to vector<2x8x6xf32>
    %88 = math.absf %6 : vector<2x8x6xf32>
    %cst_28 = arith.constant 0.000000e+00 : f32
    %89 = vector.broadcast %cst_28 : f32 to vector<2x8x6xf32>
    %90 = arith.subf %89, %88 : vector<2x8x6xf32>
    %91 = math.exp %90 : vector<2x8x6xf32>
    %cst_29 = arith.constant 0.000000e+00 : f32
    %92 = vector.broadcast %cst_29 : f32 to vector<2x8x6xf32>
    %93 = arith.cmpf oge, %6, %92 : vector<2x8x6xf32>
    %cst_30 = arith.constant 1.000000e+00 : f32
    %94 = vector.broadcast %cst_30 : f32 to vector<2x8x6xf32>
    %95 = arith.select %93, %94, %91 : vector<2x8x6xi1>, vector<2x8x6xf32>
    %cst_31 = arith.constant 1.000000e+00 : f32
    %96 = vector.broadcast %cst_31 : f32 to vector<2x8x6xf32>
    %97 = arith.addf %96, %91 : vector<2x8x6xf32>
    %98 = arith.divf %95, %97 : vector<2x8x6xf32>
    %cst_32 = arith.constant 0.000000e+00 : f32
    %99 = vector.broadcast %cst_32 : f32 to vector<2x8x6xf32>
    %100 = arith.maximumf %6, %99 : vector<2x8x6xf32>
    %101 = arith.mulf %6, %87 : vector<2x8x6xf32>
    %102 = arith.subf %100, %101 : vector<2x8x6xf32>
    %cst_33 = arith.constant 1.000000e+00 : f32
    %103 = vector.broadcast %cst_33 : f32 to vector<2x8x6xf32>
    %104 = arith.addf %103, %91 : vector<2x8x6xf32>
    %105 = math.log %104 : vector<2x8x6xf32>
    %106 = arith.addf %102, %105 : vector<2x8x6xf32>
    %107 = arith.mulf %98, %87 : vector<2x8x6xf32>
    %cst_34 = arith.constant 1.000000e+00 : f32
    %108 = vector.broadcast %cst_34 : f32 to vector<2x8x6xf32>
    %109 = arith.subf %108, %98 : vector<2x8x6xf32>
    %cst_35 = arith.constant 1.000000e+00 : f32
    %110 = vector.broadcast %cst_35 : f32 to vector<2x8x6xf32>
    %111 = arith.subf %110, %87 : vector<2x8x6xf32>
    %112 = arith.mulf %109, %111 : vector<2x8x6xf32>
    %113 = arith.addf %107, %112 : vector<2x8x6xf32>
    %cst_36 = arith.constant 1.000000e+00 : f32
    %114 = vector.broadcast %cst_36 : f32 to vector<2x8x6xf32>
    %115 = arith.subf %114, %113 : vector<2x8x6xf32>
    %116 = arith.mulf %106, %115 : vector<2x8x6xf32>
    %117 = arith.mulf %116, %115 : vector<2x8x6xf32>
    %cst_37 = arith.constant 2.500000e-01 : f32
    %118 = vector.broadcast %cst_37 : f32 to vector<2x8x6xf32>
    %119 = arith.mulf %118, %87 : vector<2x8x6xf32>
    %cst_38 = arith.constant 1.000000e+00 : f32
    %120 = vector.broadcast %cst_38 : f32 to vector<2x8x6xf32>
    %121 = arith.subf %120, %87 : vector<2x8x6xf32>
    %cst_39 = arith.constant 7.500000e-01 : f32
    %122 = vector.broadcast %cst_39 : f32 to vector<2x8x6xf32>
    %123 = arith.mulf %122, %121 : vector<2x8x6xf32>
    %124 = arith.addf %119, %123 : vector<2x8x6xf32>
    %125 = arith.mulf %124, %117 : vector<2x8x6xf32>
    %cst_40 = arith.constant dense<0.000000e+00> : vector<2x8xf32>
    %126 = vector.multi_reduction <add>, %125, %cst_40 [2] : vector<2x8x6xf32> to vector<2x8xf32>
    %127 = vector.shape_cast %126 : vector<2x8xf32> to vector<2x8x1xf32>
    %cst_41 = arith.constant dense<0xFF800000> : vector<2x8xf32>
    %128 = vector.multi_reduction <maximumf>, %6, %cst_41 [2] : vector<2x8x6xf32> to vector<2x8xf32>
    %129 = vector.shape_cast %128 : vector<2x8xf32> to vector<2x8x1xf32>
    %130 = vector.broadcast %129 : vector<2x8x1xf32> to vector<2x8x6xf32>
    %131 = arith.cmpf oeq, %6, %130 : vector<2x8x6xf32>
    %c6_i32 = arith.constant 6 : i32
    %132 = vector.broadcast %c6_i32 : i32 to vector<2x8x6xi32>
    %133 = arith.select %131, %83, %132 : vector<2x8x6xi1>, vector<2x8x6xi32>
    %cst_42 = arith.constant dense<2147483647> : vector<2x8xi32>
    %134 = vector.multi_reduction <minsi>, %133, %cst_42 [2] : vector<2x8x6xi32> to vector<2x8xi32>
    %135 = vector.shape_cast %134 : vector<2x8xi32> to vector<2x8x1xi32>
    %136 = arith.cmpi eq, %135, %10 : vector<2x8x1xi32>
    %137 = arith.extui %136 : vector<2x8x1xi1> to vector<2x8x1xi32>
    %138 = arith.sitofp %137 : vector<2x8x1xi32> to vector<2x8x1xf32>
    %139 = arith.mulf %138, %14 : vector<2x8x1xf32>
    %140 = tpu.iota {dimensions = array<i32: 2>} : vector<2x8x8xi32>
    %c0_i32_43 = arith.constant 0 : i32
    %141 = vector.broadcast %c0_i32_43 : i32 to vector<2x8x8xi32>
    %142 = arith.cmpi eq, %140, %141 : vector<2x8x8xi32>
    %cst_44 = arith.constant 0.000000e+00 : f32
    %143 = vector.shape_cast %67 : vector<2x8x1xf32> to vector<2x8x1xf32>
    %144 = vector.broadcast %143 : vector<2x8x1xf32> to vector<2x8x8xf32>
    %145 = vector.broadcast %cst_44 : f32 to vector<2x8x8xf32>
    %146 = arith.select %142, %144, %145 : vector<2x8x8xi1>, vector<2x8x8xf32>
    %c1_i32 = arith.constant 1 : i32
    %147 = vector.broadcast %c1_i32 : i32 to vector<2x8x8xi32>
    %148 = arith.cmpi eq, %140, %147 : vector<2x8x8xi32>
    %149 = vector.shape_cast %78 : vector<2x8x1xf32> to vector<2x8x1xf32>
    %150 = vector.broadcast %149 : vector<2x8x1xf32> to vector<2x8x8xf32>
    %151 = arith.select %148, %150, %146 : vector<2x8x8xi1>, vector<2x8x8xf32>
    %c2_i32 = arith.constant 2 : i32
    %152 = vector.broadcast %c2_i32 : i32 to vector<2x8x8xi32>
    %153 = arith.cmpi eq, %140, %152 : vector<2x8x8xi32>
    %154 = arith.mulf %127, %14 : vector<2x8x1xf32>
    %155 = vector.shape_cast %154 : vector<2x8x1xf32> to vector<2x8x1xf32>
    %156 = vector.broadcast %155 : vector<2x8x1xf32> to vector<2x8x8xf32>
    %157 = arith.select %153, %156, %151 : vector<2x8x8xi1>, vector<2x8x8xf32>
    %c3_i32_45 = arith.constant 3 : i32
    %158 = vector.broadcast %c3_i32_45 : i32 to vector<2x8x8xi32>
    %159 = arith.cmpi eq, %140, %158 : vector<2x8x8xi32>
    %160 = vector.shape_cast %14 : vector<2x8x1xf32> to vector<2x8x1xf32>
    %161 = vector.broadcast %160 : vector<2x8x1xf32> to vector<2x8x8xf32>
    %162 = arith.select %159, %161, %157 : vector<2x8x8xi1>, vector<2x8x8xf32>
    %c4_i32_46 = arith.constant 4 : i32
    %163 = vector.broadcast %c4_i32_46 : i32 to vector<2x8x8xi32>
    %164 = arith.cmpi eq, %140, %163 : vector<2x8x8xi32>
    %165 = vector.shape_cast %139 : vector<2x8x1xf32> to vector<2x8x1xf32>
    %166 = vector.broadcast %165 : vector<2x8x1xf32> to vector<2x8x8xf32>
    %167 = arith.select %164, %166, %162 : vector<2x8x8xi1>, vector<2x8x8xf32>
    %c5_i32 = arith.constant 5 : i32
    %168 = vector.broadcast %c5_i32 : i32 to vector<2x8x8xi32>
    %169 = arith.cmpi eq, %140, %168 : vector<2x8x8xi32>
    %170 = vector.shape_cast %82 : vector<2x8x1xf32> to vector<2x8x1xf32>
    %171 = vector.broadcast %170 : vector<2x8x1xf32> to vector<2x8x8xf32>
    %172 = arith.select %169, %171, %167 : vector<2x8x8xi1>, vector<2x8x8xf32>
    %c0_47 = arith.constant 0 : index
    %c0_48 = arith.constant 0 : index
    %173 = vector.load %arg10[%c0_47, %c0_48] : memref<2x8xf32, #tpu.memory_space<vmem>>, vector<2x8xf32>
    %174 = vector.broadcast %22 : vector<2x8x1xf32> to vector<2x8x8xf32>
    %175 = arith.mulf %172, %174 : vector<2x8x8xf32>
    %cst_49 = arith.constant dense<0.000000e+00> : vector<2x8xf32>
    %176 = vector.multi_reduction <add>, %175, %cst_49 [1] : vector<2x8x8xf32> to vector<2x8xf32>
    %177 = arith.addf %173, %176 : vector<2x8xf32>
    %c0_50 = arith.constant 0 : index
    %c0_51 = arith.constant 0 : index
    %178 = vector.load %arg10[%c0_50, %c0_51] : memref<2x8xf32, #tpu.memory_space<vmem>>, vector<2x8xf32>
    tpu.vector_store %arg10[%c0_50, %c0_51], %177 {strides = array<i32>} : memref<2x8xf32, #tpu.memory_space<vmem>>, vector<2x8xf32>,
    %c0_i32_52 = arith.constant 0 : i32
    %179 = arith.cmpi eq, %arg1, %c0_i32_52 : i32
    %180 = arith.extui %179 : i1 to i32
    %c0_i32_53 = arith.constant 0 : i32
    %181 = arith.cmpi ne, %180, %c0_i32_53 : i32
    scf.if %181 {
      %c0_54 = arith.constant 0 : index
      %c0_55 = arith.constant 0 : index
      %182 = vector.load %arg5[%c0_54, %c0_55] : memref<2x1xf32, #tpu.memory_space<vmem>>, vector<2x1xf32>
      %c0_56 = arith.constant 0 : index
      %c0_57 = arith.constant 0 : index
      %183 = vector.load %arg10[%c0_56, %c0_57] : memref<2x8xf32, #tpu.memory_space<vmem>>, vector<2x8xf32>
      %cst_58 = arith.constant dense<0.000000e+00> : vector<1xf32>
      %184 = vector.multi_reduction <add>, %182, %cst_58 [0] : vector<2x1xf32> to vector<1xf32>
      %185 = vector.shape_cast %184 : vector<1xf32> to vector<1x1xf32>
      %cst_59 = arith.constant 1.000000e+00 : f32
      %186 = vector.broadcast %cst_59 : f32 to vector<1x1xf32>
      %187 = arith.maximumf %185, %186 : vector<1x1xf32>
      %cst_60 = arith.constant dense<0.000000e+00> : vector<8xf32>
      %188 = vector.multi_reduction <add>, %183, %cst_60 [0] : vector<2x8xf32> to vector<8xf32>
      %189 = vector.shape_cast %188 : vector<8xf32> to vector<1x8xf32>
      %190 = vector.extract_strided_slice %189 {offsets = [0, 0], sizes = [1, 1], strides = [1, 1]} : vector<1x8xf32> to vector<1x1xf32>
      %191 = vector.extract_strided_slice %189 {offsets = [0, 1], sizes = [1, 1], strides = [1, 1]} : vector<1x8xf32> to vector<1x1xf32>
      %192 = vector.extract_strided_slice %189 {offsets = [0, 2], sizes = [1, 1], strides = [1, 1]} : vector<1x8xf32> to vector<1x1xf32>
      %193 = vector.extract_strided_slice %189 {offsets = [0, 4], sizes = [1, 1], strides = [1, 1]} : vector<1x8xf32> to vector<1x1xf32>
      %194 = vector.extract_strided_slice %189 {offsets = [0, 3], sizes = [1, 1], strides = [1, 1]} : vector<1x8xf32> to vector<1x1xf32>
      %cst_61 = arith.constant 1.000000e+00 : f32
      %195 = vector.broadcast %cst_61 : f32 to vector<1x1xf32>
      %196 = arith.maximumf %194, %195 : vector<1x1xf32>
      %197 = vector.extract_strided_slice %183 {offsets = [0, 5], sizes = [2, 1], strides = [1, 1]} : vector<2x8xf32> to vector<2x1xf32>
      %198 = arith.subf %197, %182 : vector<2x1xf32>
      %199 = math.absf %198 : vector<2x1xf32>
      %cst_62 = arith.constant dense<0.000000e+00> : vector<1xf32>
      %200 = vector.multi_reduction <add>, %199, %cst_62 [0] : vector<2x1xf32> to vector<1xf32>
      %201 = vector.shape_cast %200 : vector<1xf32> to vector<1x1xf32>
      %cst_63 = arith.constant 2.000000e+00 : f32
      %202 = vector.broadcast %cst_63 : f32 to vector<1x1xf32>
      %203 = arith.divf %201, %202 : vector<1x1xf32>
      %c0_64 = arith.constant 0 : index
      %c0_65 = arith.constant 0 : index
      %c0_66 = arith.constant 0 : index
      %204 = vector.load %arg6[%c0_64, %c0_65, %c0_66] : memref<1x4x128xf32, #tpu.memory_space<vmem>>, vector<1x4x128xf32>
      %205 = vector.shape_cast %204 : vector<1x4x128xf32> to vector<4x128xf32>
      %c0_67 = arith.constant 0 : index
      %c0_68 = arith.constant 0 : index
      %c0_69 = arith.constant 0 : index
      %206 = vector.load %arg7[%c0_67, %c0_68, %c0_69] : memref<1x4x128xf32, #tpu.memory_space<vmem>>, vector<1x4x128xf32>
      %207 = vector.shape_cast %206 : vector<1x4x128xf32> to vector<4x128xf32>
      %c0_70 = arith.constant 0 : index
      %c0_71 = arith.constant 0 : index
      %c0_72 = arith.constant 0 : index
      %208 = vector.load %arg8[%c0_70, %c0_71, %c0_72] : memref<1x1x128xf32, #tpu.memory_space<vmem>>, vector<1x1x128xf32>
      %209 = vector.shape_cast %208 : vector<1x1x128xf32> to vector<1x128xf32>
      %210 = arith.subf %205, %207 : vector<4x128xf32>
      %211 = math.absf %210 : vector<4x128xf32>
      %212 = vector.broadcast %209 : vector<1x128xf32> to vector<4x128xf32>
      %213 = arith.mulf %211, %212 : vector<4x128xf32>
      %214 = vector.shape_cast %213 : vector<4x128xf32> to vector<1x4x128xf32>
      %cst_73 = arith.constant dense<0.000000e+00> : vector<1xf32>
      %215 = vector.multi_reduction <add>, %214, %cst_73 [1, 2] : vector<1x4x128xf32> to vector<1xf32>
      %216 = vector.shape_cast %215 : vector<1xf32> to vector<1x1x1xf32>
      %217 = vector.extract %216[0, 0, 0] : f32 from vector<1x1x1xf32>
      %218 = vector.broadcast %217 : f32 to vector<1x1xf32>
      %219 = vector.extract_strided_slice %205 {offsets = [0, 0], sizes = [1, 128], strides = [1, 1]} : vector<4x128xf32> to vector<1x128xf32>
      %220 = vector.extract_strided_slice %205 {offsets = [1, 0], sizes = [1, 128], strides = [1, 1]} : vector<4x128xf32> to vector<1x128xf32>
      %221 = vector.extract_strided_slice %205 {offsets = [2, 0], sizes = [1, 128], strides = [1, 1]} : vector<4x128xf32> to vector<1x128xf32>
      %222 = vector.extract_strided_slice %205 {offsets = [3, 0], sizes = [1, 128], strides = [1, 1]} : vector<4x128xf32> to vector<1x128xf32>
      %223 = vector.extract_strided_slice %207 {offsets = [0, 0], sizes = [1, 128], strides = [1, 1]} : vector<4x128xf32> to vector<1x128xf32>
      %224 = vector.extract_strided_slice %207 {offsets = [1, 0], sizes = [1, 128], strides = [1, 1]} : vector<4x128xf32> to vector<1x128xf32>
      %225 = vector.extract_strided_slice %207 {offsets = [2, 0], sizes = [1, 128], strides = [1, 1]} : vector<4x128xf32> to vector<1x128xf32>
      %226 = vector.extract_strided_slice %207 {offsets = [3, 0], sizes = [1, 128], strides = [1, 1]} : vector<4x128xf32> to vector<1x128xf32>
      %cst_74 = arith.constant 5.000000e-01 : f32
      %227 = vector.broadcast %cst_74 : f32 to vector<1x128xf32>
      %228 = arith.mulf %227, %221 : vector<1x128xf32>
      %229 = arith.subf %219, %228 : vector<1x128xf32>
      %cst_75 = arith.constant 5.000000e-01 : f32
      %230 = vector.broadcast %cst_75 : f32 to vector<1x128xf32>
      %231 = arith.mulf %230, %221 : vector<1x128xf32>
      %232 = arith.addf %219, %231 : vector<1x128xf32>
      %cst_76 = arith.constant 5.000000e-01 : f32
      %233 = vector.broadcast %cst_76 : f32 to vector<1x128xf32>
      %234 = arith.mulf %233, %222 : vector<1x128xf32>
      %235 = arith.subf %220, %234 : vector<1x128xf32>
      %cst_77 = arith.constant 5.000000e-01 : f32
      %236 = vector.broadcast %cst_77 : f32 to vector<1x128xf32>
      %237 = arith.mulf %236, %222 : vector<1x128xf32>
      %238 = arith.addf %220, %237 : vector<1x128xf32>
      %cst_78 = arith.constant 5.000000e-01 : f32
      %239 = vector.broadcast %cst_78 : f32 to vector<1x128xf32>
      %240 = arith.mulf %239, %225 : vector<1x128xf32>
      %241 = arith.subf %223, %240 : vector<1x128xf32>
      %cst_79 = arith.constant 5.000000e-01 : f32
      %242 = vector.broadcast %cst_79 : f32 to vector<1x128xf32>
      %243 = arith.mulf %242, %225 : vector<1x128xf32>
      %244 = arith.addf %223, %243 : vector<1x128xf32>
      %cst_80 = arith.constant 5.000000e-01 : f32
      %245 = vector.broadcast %cst_80 : f32 to vector<1x128xf32>
      %246 = arith.mulf %245, %226 : vector<1x128xf32>
      %247 = arith.subf %224, %246 : vector<1x128xf32>
      %cst_81 = arith.constant 5.000000e-01 : f32
      %248 = vector.broadcast %cst_81 : f32 to vector<1x128xf32>
      %249 = arith.mulf %248, %226 : vector<1x128xf32>
      %250 = arith.addf %224, %249 : vector<1x128xf32>
      %251 = arith.subf %232, %229 : vector<1x128xf32>
      %252 = arith.subf %238, %235 : vector<1x128xf32>
      %253 = arith.mulf %251, %252 : vector<1x128xf32>
      %254 = arith.subf %244, %241 : vector<1x128xf32>
      %255 = arith.subf %250, %247 : vector<1x128xf32>
      %256 = arith.mulf %254, %255 : vector<1x128xf32>
      %257 = arith.minimumf %232, %244 : vector<1x128xf32>
      %258 = arith.maximumf %229, %241 : vector<1x128xf32>
      %259 = arith.subf %257, %258 : vector<1x128xf32>
      %cst_82 = arith.constant 0.000000e+00 : f32
      %260 = vector.broadcast %cst_82 : f32 to vector<1x128xf32>
      %261 = arith.maximumf %259, %260 : vector<1x128xf32>
      %262 = arith.minimumf %238, %250 : vector<1x128xf32>
      %263 = arith.maximumf %235, %247 : vector<1x128xf32>
      %264 = arith.subf %262, %263 : vector<1x128xf32>
      %cst_83 = arith.constant 0.000000e+00 : f32
      %265 = vector.broadcast %cst_83 : f32 to vector<1x128xf32>
      %266 = arith.maximumf %264, %265 : vector<1x128xf32>
      %267 = arith.mulf %261, %266 : vector<1x128xf32>
      %268 = arith.addf %253, %256 : vector<1x128xf32>
      %269 = arith.subf %268, %267 : vector<1x128xf32>
      %cst_84 = arith.constant 1.000000e-07 : f32
      %270 = vector.broadcast %cst_84 : f32 to vector<1x128xf32>
      %271 = arith.maximumf %269, %270 : vector<1x128xf32>
      %272 = arith.divf %267, %271 : vector<1x128xf32>
      %273 = arith.maximumf %232, %244 : vector<1x128xf32>
      %274 = arith.minimumf %229, %241 : vector<1x128xf32>
      %275 = arith.subf %273, %274 : vector<1x128xf32>
      %276 = arith.maximumf %238, %250 : vector<1x128xf32>
      %277 = arith.minimumf %235, %247 : vector<1x128xf32>
      %278 = arith.subf %276, %277 : vector<1x128xf32>
      %279 = arith.mulf %275, %278 : vector<1x128xf32>
      %280 = arith.subf %279, %269 : vector<1x128xf32>
      %cst_85 = arith.constant 1.000000e-07 : f32
      %281 = vector.broadcast %cst_85 : f32 to vector<1x128xf32>
      %282 = arith.maximumf %279, %281 : vector<1x128xf32>
      %283 = arith.divf %280, %282 : vector<1x128xf32>
      %284 = arith.subf %272, %283 : vector<1x128xf32>
      %cst_86 = arith.constant 1.000000e+00 : f32
      %285 = vector.broadcast %cst_86 : f32 to vector<1x128xf32>
      %286 = arith.subf %285, %284 : vector<1x128xf32>
      %287 = arith.mulf %286, %209 : vector<1x128xf32>
      %288 = vector.shape_cast %287 : vector<1x128xf32> to vector<1x1x128xf32>
      %cst_87 = arith.constant dense<0.000000e+00> : vector<1xf32>
      %289 = vector.multi_reduction <add>, %288, %cst_87 [1, 2] : vector<1x1x128xf32> to vector<1xf32>
      %290 = vector.shape_cast %289 : vector<1xf32> to vector<1x1x1xf32>
      %291 = vector.extract %290[0, 0, 0] : f32 from vector<1x1x1xf32>
      %292 = vector.broadcast %291 : f32 to vector<1x1xf32>
      %293 = arith.divf %190, %187 : vector<1x1xf32>
      %cst_88 = arith.constant 1.000000e+02 : f32
      %294 = vector.broadcast %cst_88 : f32 to vector<1x1xf32>
      %295 = arith.mulf %294, %191 : vector<1x1xf32>
      %296 = arith.divf %295, %187 : vector<1x1xf32>
      %cst_89 = arith.constant 1.000000e+02 : f32
      %297 = vector.broadcast %cst_89 : f32 to vector<1x1xf32>
      %298 = arith.subf %297, %296 : vector<1x1xf32>
      %299 = arith.divf %192, %196 : vector<1x1xf32>
      %cst_90 = arith.constant 1.000000e+02 : f32
      %300 = vector.broadcast %cst_90 : f32 to vector<1x1xf32>
      %301 = arith.mulf %300, %193 : vector<1x1xf32>
      %302 = arith.divf %301, %196 : vector<1x1xf32>
      %cst_91 = arith.constant 1.000000e+02 : f32
      %303 = vector.broadcast %cst_91 : f32 to vector<1x1xf32>
      %304 = arith.subf %303, %302 : vector<1x1xf32>
      %305 = arith.divf %218, %187 : vector<1x1xf32>
      %306 = arith.divf %292, %187 : vector<1x1xf32>
      %307 = tpu.iota {dimensions = array<i32: 1>} : vector<8x128xi32>
      %c0_i32_92 = arith.constant 0 : i32
      %308 = vector.broadcast %c0_i32_92 : i32 to vector<8x128xi32>
      %309 = arith.cmpi eq, %307, %308 : vector<8x128xi32>
      %cst_93 = arith.constant 0.000000e+00 : f32
      %310 = vector.shape_cast %293 : vector<1x1xf32> to vector<1x1xf32>
      %311 = vector.broadcast %310 : vector<1x1xf32> to vector<8x128xf32>
      %312 = vector.broadcast %cst_93 : f32 to vector<8x128xf32>
      %313 = arith.select %309, %311, %312 : vector<8x128xi1>, vector<8x128xf32>
      %c1_i32_94 = arith.constant 1 : i32
      %314 = vector.broadcast %c1_i32_94 : i32 to vector<8x128xi32>
      %315 = arith.cmpi eq, %307, %314 : vector<8x128xi32>
      %316 = vector.shape_cast %298 : vector<1x1xf32> to vector<1x1xf32>
      %317 = vector.broadcast %316 : vector<1x1xf32> to vector<8x128xf32>
      %318 = arith.select %315, %317, %313 : vector<8x128xi1>, vector<8x128xf32>
      %c2_i32_95 = arith.constant 2 : i32
      %319 = vector.broadcast %c2_i32_95 : i32 to vector<8x128xi32>
      %320 = arith.cmpi eq, %307, %319 : vector<8x128xi32>
      %321 = vector.shape_cast %203 : vector<1x1xf32> to vector<1x1xf32>
      %322 = vector.broadcast %321 : vector<1x1xf32> to vector<8x128xf32>
      %323 = arith.select %320, %322, %318 : vector<8x128xi1>, vector<8x128xf32>
      %c3_i32_96 = arith.constant 3 : i32
      %324 = vector.broadcast %c3_i32_96 : i32 to vector<8x128xi32>
      %325 = arith.cmpi eq, %307, %324 : vector<8x128xi32>
      %326 = vector.shape_cast %299 : vector<1x1xf32> to vector<1x1xf32>
      %327 = vector.broadcast %326 : vector<1x1xf32> to vector<8x128xf32>
      %328 = arith.select %325, %327, %323 : vector<8x128xi1>, vector<8x128xf32>
      %c4_i32_97 = arith.constant 4 : i32
      %329 = vector.broadcast %c4_i32_97 : i32 to vector<8x128xi32>
      %330 = arith.cmpi eq, %307, %329 : vector<8x128xi32>
      %331 = vector.shape_cast %304 : vector<1x1xf32> to vector<1x1xf32>
      %332 = vector.broadcast %331 : vector<1x1xf32> to vector<8x128xf32>
      %333 = arith.select %330, %332, %328 : vector<8x128xi1>, vector<8x128xf32>
      %c5_i32_98 = arith.constant 5 : i32
      %334 = vector.broadcast %c5_i32_98 : i32 to vector<8x128xi32>
      %335 = arith.cmpi eq, %307, %334 : vector<8x128xi32>
      %336 = vector.shape_cast %305 : vector<1x1xf32> to vector<1x1xf32>
      %337 = vector.broadcast %336 : vector<1x1xf32> to vector<8x128xf32>
      %338 = arith.select %335, %337, %333 : vector<8x128xi1>, vector<8x128xf32>
      %c6_i32_99 = arith.constant 6 : i32
      %339 = vector.broadcast %c6_i32_99 : i32 to vector<8x128xi32>
      %340 = arith.cmpi eq, %307, %339 : vector<8x128xi32>
      %341 = vector.shape_cast %306 : vector<1x1xf32> to vector<1x1xf32>
      %342 = vector.broadcast %341 : vector<1x1xf32> to vector<8x128xf32>
      %343 = arith.select %340, %342, %338 : vector<8x128xi1>, vector<8x128xf32>
      %c0_100 = arith.constant 0 : index
      %c0_101 = arith.constant 0 : index
      %c0_102 = arith.constant 0 : index
      %344 = vector.load %arg9[%c0_100, %c0_101, %c0_102] : memref<1x8x128xf32, #tpu.memory_space<vmem>>, vector<1x8x128xf32>
      %345 = vector.shape_cast %344 : vector<1x8x128xf32> to vector<8x128xf32>
      %346 = vector.shape_cast %343 : vector<8x128xf32> to vector<1x8x128xf32>
      tpu.vector_store %arg9[%c0_100, %c0_101, %c0_102], %346 {strides = array<i32>} : memref<1x8x128xf32, #tpu.memory_space<vmem>>, vector<1x8x128xf32>,
    } else {
    }
    return
  }
  func.func @transform_0(%arg0: i32, %arg1: i32) -> (i32, i32, i32, i32) {
    %c0_i32 = arith.constant 0 : i32
    %c0_i32_0 = arith.constant 0 : i32
    %c0_i32_1 = arith.constant 0 : i32
    return %arg0, %c0_i32, %arg1, %c0_i32_0 : i32, i32, i32, i32
  }
  func.func @transform_1(%arg0: i32, %arg1: i32) -> (i32, i32, i32, i32) {
    %c0_i32 = arith.constant 0 : i32
    %c0_i32_0 = arith.constant 0 : i32
    %c0_i32_1 = arith.constant 0 : i32
    return %arg0, %c0_i32, %arg1, %c0_i32_0 : i32, i32, i32, i32
  }
  func.func @transform_2(%arg0: i32, %arg1: i32) -> (i32, i32, i32, i32) {
    %c0_i32 = arith.constant 0 : i32
    %c0_i32_0 = arith.constant 0 : i32
    %c0_i32_1 = arith.constant 0 : i32
    return %arg0, %c0_i32, %arg1, %c0_i32_0 : i32, i32, i32, i32
  }
  func.func @transform_3(%arg0: i32, %arg1: i32) -> (i32, i32) {
    %c0_i32 = arith.constant 0 : i32
    %c0_i32_0 = arith.constant 0 : i32
    %c0_i32_1 = arith.constant 0 : i32
    return %c0_i32, %c0_i32_0 : i32, i32
  }
  func.func @transform_4(%arg0: i32, %arg1: i32) -> (i32, i32, i32) {
    %c0_i32 = arith.constant 0 : i32
    %c0_i32_0 = arith.constant 0 : i32
    %c0_i32_1 = arith.constant 0 : i32
    return %arg0, %c0_i32, %c0_i32_0 : i32, i32, i32
  }
  func.func @transform_5(%arg0: i32, %arg1: i32) -> (i32, i32, i32) {
    %c0_i32 = arith.constant 0 : i32
    %c0_i32_0 = arith.constant 0 : i32
    %c0_i32_1 = arith.constant 0 : i32
    return %arg0, %c0_i32, %c0_i32_0 : i32, i32, i32
  }
  func.func @transform_6(%arg0: i32, %arg1: i32) -> (i32, i32, i32) {
    %c0_i32 = arith.constant 0 : i32
    %c0_i32_0 = arith.constant 0 : i32
    %c0_i32_1 = arith.constant 0 : i32
    return %arg0, %c0_i32, %c0_i32_0 : i32, i32, i32
  }
  func.func @transform_7(%arg0: i32, %arg1: i32) -> (i32, i32, i32) {
    %c0_i32 = arith.constant 0 : i32
    %c0_i32_0 = arith.constant 0 : i32
    %c0_i32_1 = arith.constant 0 : i32
    return %arg0, %c0_i32, %c0_i32_0 : i32, i32, i32
  }
}

</mosaic_0001>

<llo_original>
// kernel: set_criterion_forward.1
$region0: #{set_criterion_forward.1}
  #allocation0 [shape = 'u32[]', space=smem, size = 0x4, offset = 0x4, fixed_abs, tag = 'smem constant byte address 0x4 - core index']
  #allocation1 [shape = 'u32[72,128]{1,0:T(1,128)}', space=vmem, size = 0x9000, scoped, tag = 'internal scratch']
  #allocation2 [shape = 'f32[2,8]{1,0:T(2,128)}', space=vmem, size = 0x400, scoped, tag = 'scratch operand']
  %s0 = inlined_call_operand.vmem [shape: f32[3,2,8,4], index: 0, kind: input, shape index: {}]
  %s1 = inlined_call_operand.vmem [shape: s32[3,2,8,2], index: 1, kind: input, shape index: {}]
  %s2 = inlined_call_operand.vmem [shape: f32[3,2,8,6], index: 2, kind: input, shape index: {}]
  %s3 = inlined_call_operand.vmem [shape: f32[2,1], index: 3, kind: input, shape index: {}]
  %s4 = inlined_call_operand.vmem [shape: f32[3,4,128], index: 4, kind: input, shape index: {}]
  %s5 = inlined_call_operand.vmem [shape: f32[3,4,128], index: 5, kind: input, shape index: {}]
  %s6 = inlined_call_operand.vmem [shape: f32[3,1,128], index: 6, kind: input, shape index: {}]
  %s7 = inlined_call_operand.vmem [shape: f32[3,8,128], index: 7, kind: output, shape index: {}]
  %s8 = sld [smem:[#allocation0]]
  $region69: #{set_criterion_forward.1} parent=0
    _
  %s10 = ssub.s32 1, %s8
  %s11 = scalar_select 0, %s10, %s8
  loop: start=0, step=1, limit=5
  $region2: #{set_criterion_forward.1} parent=0 // loop_pre_header
    _
  $region3: #{set_criterion_forward.1} parent=0 // loop_header
    %s13 = sphi 0, %s17
    %p14 = scmp.ge.s32.totalorder %s13, 5
    %s20 = sphi 0, %s32
    %s21 = sphi 0, %s28
    %s22 = sphi 0, %s20
    %s23 = sphi 0, %s21
    %s24 = sphi 0, %s22
    %s25 = sphi 0, %s23
    %s37 = sphi 0, %s39
    %s40 = sphi 0, %s37
    %s41 = sphi 0, %s40
    %s57 = sphi 0, %s41
    %s65 = sphi 0, %s67
    %s68 = sphi 0, %s65
    %s69 = sphi 0, %s68
    %s85 = sphi 0, %s69
    %s93 = sphi 0, %s95
    %s96 = sphi 0, %s93
    %s97 = sphi 0, %s96
    %s113 = sphi 0, %s97
    %s117 = sphi 0, %s117
    %s119 = sphi 0, %s117
    %s120 = sphi 0, %s119
    %s134 = sphi 0, %s120
    %s140 = sphi 0, %s142
    %s143 = sphi 0, %s140
    %s144 = sphi 0, %s143
    %s160 = sphi 0, %s144
    %s166 = sphi 0, %s168
    %s169 = sphi 0, %s166
    %s170 = sphi 0, %s169
    %s186 = sphi 0, %s170
    %s192 = sphi 0, %s194
    %s195 = sphi 0, %s192
    %s196 = sphi 0, %s195
    %s212 = sphi 0, %s196
    %s218 = sphi 0, %s220
    %s221 = sphi 0, %s218
    %s222 = sphi 0, %s221
    %s238 = sphi 0, %s222
  $region4: #{set_criterion_forward.1} parent=0 // loop_header_branch
    %16 = sbr.rel (%p14) target = $region8
  $region5: #{set_criterion_forward.1} parent=0 // loop_body
    %s18 = ssub.s32 %s13, 1
    %s19 = ssub.s32 %s13, 2
    %s26 = sadd.s32 1, %s21
    %p27 = scmp.ge.s32.totalorder %s26, 1
    %s28 = scalar_select %p27, 0, %s26
    %s29 = sadd.s32 1, %s20
    %s30 = scalar_select %p27, %s29, %s20
    %p31 = scmp.ge.s32.totalorder %s30, 3
    %s32 = scalar_select %p31, 0, %s30
    %s33 = ssub.s32 %s20, %s32
    %s34 = ssub.s32 %s21, %s28
    %s35 = sor.u32 %s33, %s34
    %p36 = scmp.eq.s32.totalorder %s35, 0
    %s38 = sadd.s32 %s37, 1
    %s39 = scalar_select %p36, %s37, %s38
    %p42 = pneg %p36
    %p43 = scmp.eq.s32.totalorder %s13, 2
    %p44 = por %p42, %p43
    %p45 = scmp.ne.s32.totalorder %s37, %s40
    %p46 = scmp.eq.s32.totalorder %s13, 0
    %p47 = por %p45, %p46
    %p48 = scmp.ne.s32.totalorder %s37, %s40
    %p49 = scmp.eq.s32.totalorder %s18, 2
    %p50 = por %p48, %p49
    %p51 = scmp.ne.s32.totalorder %s40, %s41
    %p52 = scmp.eq.s32.totalorder %s18, 0
    %p53 = por %p51, %p52
    %p54 = scmp.ne.s32.totalorder %s40, %s41
    %p55 = scmp.eq.s32.totalorder %s19, 2
    %p56 = por %p54, %p55
    %p58 = scmp.ne.s32.totalorder %s41, %s57
    %p59 = scmp.eq.s32.totalorder %s19, 0
    %p60 = por %p58, %p59
    %s61 = ssub.s32 %s20, %s32
    %s62 = ssub.s32 %s21, %s28
    %s63 = sor.u32 %s61, %s62
    %p64 = scmp.eq.s32.totalorder %s63, 0
    %s66 = sadd.s32 %s65, 1
    %s67 = scalar_select %p64, %s65, %s66
    %p70 = pneg %p64
    %p71 = scmp.eq.s32.totalorder %s13, 2
    %p72 = por %p70, %p71
    %p73 = scmp.ne.s32.totalorder %s65, %s68
    %p74 = scmp.eq.s32.totalorder %s13, 0
    %p75 = por %p73, %p74
    %p76 = scmp.ne.s32.totalorder %s65, %s68
    %p77 = scmp.eq.s32.totalorder %s18, 2
    %p78 = por %p76, %p77
    %p79 = scmp.ne.s32.totalorder %s68, %s69
    %p80 = scmp.eq.s32.totalorder %s18, 0
    %p81 = por %p79, %p80
    %p82 = scmp.ne.s32.totalorder %s68, %s69
    %p83 = scmp.eq.s32.totalorder %s19, 2
    %p84 = por %p82, %p83
    %p86 = scmp.ne.s32.totalorder %s69, %s85
    %p87 = scmp.eq.s32.totalorder %s19, 0
    %p88 = por %p86, %p87
    %s89 = ssub.s32 %s20, %s32
    %s90 = ssub.s32 %s21, %s28
    %s91 = sor.u32 %s89, %s90
    %p92 = scmp.eq.s32.totalorder %s91, 0
    %s94 = sadd.s32 %s93, 1
    %s95 = scalar_select %p92, %s93, %s94
    %p98 = pneg %p92
    %p99 = scmp.eq.s32.totalorder %s13, 2
    %p100 = por %p98, %p99
    %p101 = scmp.ne.s32.totalorder %s93, %s96
    %p102 = scmp.eq.s32.totalorder %s13, 0
    %p103 = por %p101, %p102
    %p104 = scmp.ne.s32.totalorder %s93, %s96
    %p105 = scmp.eq.s32.totalorder %s18, 2
    %p106 = por %p104, %p105
    %p107 = scmp.ne.s32.totalorder %s96, %s97
    %p108 = scmp.eq.s32.totalorder %s18, 0
    %p109 = por %p107, %p108
    %p110 = scmp.ne.s32.totalorder %s96, %s97
    %p111 = scmp.eq.s32.totalorder %s19, 2
    %p112 = por %p110, %p111
    %p114 = scmp.ne.s32.totalorder %s97, %s113
    %p115 = scmp.eq.s32.totalorder %s19, 0
    %p116 = por %p114, %p115
    %s118 = sadd.s32 %s117, 1
    %p121 = scmp.eq.s32.totalorder %s13, 2
    %p122 = scmp.ne.s32.totalorder %s117, %s119
    %p123 = scmp.eq.s32.totalorder %s13, 0
    %p124 = por %p122, %p123
    %p125 = scmp.ne.s32.totalorder %s117, %s119
    %p126 = scmp.eq.s32.totalorder %s18, 2
    %p127 = por %p125, %p126
    %p128 = scmp.ne.s32.totalorder %s119, %s120
    %p129 = scmp.eq.s32.totalorder %s18, 0
    %p130 = por %p128, %p129
    %p131 = scmp.ne.s32.totalorder %s119, %s120
    %p132 = scmp.eq.s32.totalorder %s19, 2
    %p133 = por %p131, %p132
    %p135 = scmp.ne.s32.totalorder %s120, %s134
    %p136 = scmp.eq.s32.totalorder %s19, 0
    %p137 = por %p135, %p136
    %s138 = ssub.s32 %s20, %s32
    %p139 = scmp.eq.s32.totalorder %s138, 0
    %s141 = sadd.s32 %s140, 1
    %s142 = scalar_select %p139, %s140, %s141
    %p145 = pneg %p139
    %p146 = scmp.eq.s32.totalorder %s13, 2
    %p147 = por %p145, %p146
    %p148 = scmp.ne.s32.totalorder %s140, %s143
    %p149 = scmp.eq.s32.totalorder %s13, 0
    %p150 = por %p148, %p149
    %p151 = scmp.ne.s32.totalorder %s140, %s143
    %p152 = scmp.eq.s32.totalorder %s18, 2
    %p153 = por %p151, %p152
    %p154 = scmp.ne.s32.totalorder %s143, %s144
    %p155 = scmp.eq.s32.totalorder %s18, 0
    %p156 = por %p154, %p155
    %p157 = scmp.ne.s32.totalorder %s143, %s144
    %p158 = scmp.eq.s32.totalorder %s19, 2
    %p159 = por %p157, %p158
    %p161 = scmp.ne.s32.totalorder %s144, %s160
    %p162 = scmp.eq.s32.totalorder %s19, 0
    %p163 = por %p161, %p162
    %s164 = ssub.s32 %s20, %s32
    %p165 = scmp.eq.s32.totalorder %s164, 0
    %s167 = sadd.s32 %s166, 1
    %s168 = scalar_select %p165, %s166, %s167
    %p171 = pneg %p165
    %p172 = scmp.eq.s32.totalorder %s13, 2
    %p173 = por %p171, %p172
    %p174 = scmp.ne.s32.totalorder %s166, %s169
    %p175 = scmp.eq.s32.totalorder %s13, 0
    %p176 = por %p174, %p175
    %p177 = scmp.ne.s32.totalorder %s166, %s169
    %p178 = scmp.eq.s32.totalorder %s18, 2
    %p179 = por %p177, %p178
    %p180 = scmp.ne.s32.totalorder %s169, %s170
    %p181 = scmp.eq.s32.totalorder %s18, 0
    %p182 = por %p180, %p181
    %p183 = scmp.ne.s32.totalorder %s169, %s170
    %p184 = scmp.eq.s32.totalorder %s19, 2
    %p185 = por %p183, %p184
    %p187 = scmp.ne.s32.totalorder %s170, %s186
    %p188 = scmp.eq.s32.totalorder %s19, 0
    %p189 = por %p187, %p188
    %s190 = ssub.s32 %s20, %s32
    %p191 = scmp.eq.s32.totalorder %s190, 0
    %s193 = sadd.s32 %s192, 1
    %s194 = scalar_select %p191, %s192, %s193
    %p197 = pneg %p191
    %p198 = scmp.eq.s32.totalorder %s13, 2
    %p199 = por %p197, %p198
    %p200 = scmp.ne.s32.totalorder %s192, %s195
    %p201 = scmp.eq.s32.totalorder %s13, 0
    %p202 = por %p200, %p201
    %p203 = scmp.ne.s32.totalorder %s192, %s195
    %p204 = scmp.eq.s32.totalorder %s18, 2
    %p205 = por %p203, %p204
    %p206 = scmp.ne.s32.totalorder %s195, %s196
    %p207 = scmp.eq.s32.totalorder %s18, 0
    %p208 = por %p206, %p207
    %p209 = scmp.ne.s32.totalorder %s195, %s196
    %p210 = scmp.eq.s32.totalorder %s19, 2
    %p211 = por %p209, %p210
    %p213 = scmp.ne.s32.totalorder %s196, %s212
    %p214 = scmp.eq.s32.totalorder %s19, 0
    %p215 = por %p213, %p214
    %s216 = ssub.s32 %s20, %s32
    %p217 = scmp.eq.s32.totalorder %s216, 0
    %s219 = sadd.s32 %s218, 1
    %s220 = scalar_select %p217, %s218, %s219
    %p223 = pneg %p217
    %p224 = scmp.eq.s32.totalorder %s13, 2
    %p225 = por %p223, %p224
    %p226 = scmp.ne.s32.totalorder %s218, %s221
    %p227 = scmp.eq.s32.totalorder %s13, 0
    %p228 = por %p226, %p227
    %p229 = scmp.ne.s32.totalorder %s218, %s221
    %p230 = scmp.eq.s32.totalorder %s18, 2
    %p231 = por %p229, %p230
    %p232 = scmp.ne.s32.totalorder %s221, %s222
    %p233 = scmp.eq.s32.totalorder %s18, 0
    %p234 = por %p232, %p233
    %p235 = scmp.ne.s32.totalorder %s221, %s222
    %p236 = scmp.eq.s32.totalorder %s19, 2
    %p237 = por %p235, %p236
    %p239 = scmp.ne.s32.totalorder %s222, %s238
    %p240 = scmp.eq.s32.totalorder %s19, 0
    %p241 = por %p239, %p240
    %p242 = scmp.le.s32.totalorder 1, %s13
    %p243 = scmp.lt.s32.totalorder %s13, 4
    %p244 = pnand %p242, %p243
    %p245 = pneg %p244
    // Predicated region
    $region9: #{set_criterion_forward.1} parent=5 // pred_check
      _
    $region10: #{set_criterion_forward.1} parent=5 // pred_check_branch
      %247 = sbr.rel (%p244) target = $region12
    $region11: #{set_criterion_forward.1} parent=5 // pred_region
      %s248 = ssub.s32 %s13, 1
      // Predicated region
      $region13: #{set_criterion_forward.1} parent=11 // pred_check
        %p249 = pneg %p130
      $region14: #{set_criterion_forward.1} parent=11 // pred_check_branch
        %251 = sbr.rel (%p249) target = $region16
      $region15: #{set_criterion_forward.1} parent=11 // pred_region
        _
      $region16: #{set_criterion_forward.1} parent=11 // pred_fallthru
        _
    $region12: #{set_criterion_forward.1} parent=5 // pred_fallthru
      _
    %p252 = scmp.lt.s32.totalorder %s13, 3
    // Predicated region
    $region17: #{set_criterion_forward.1} parent=5 // pred_check
      %p253 = pneg %p252
    $region18: #{set_criterion_forward.1} parent=5 // pred_check_branch
      %255 = sbr.rel (%p253) target = $region20
    $region19: #{set_criterion_forward.1} parent=5 // pred_region
      // Predicated region
      $region21: #{set_criterion_forward.1} parent=19 // pred_check
        %p256 = pneg %p47
      $region22: #{set_criterion_forward.1} parent=19 // pred_check_branch
        %258 = sbr.rel (%p256) target = $region24
      $region23: #{set_criterion_forward.1} parent=19 // pred_region
        %p259 = scmp.lt.s32.totalorder %s20, 2
        %s260 = scalar_select %p259, %s20, 2
        %p261 = scmp.lt.s32.totalorder %s21, 0
        %s262 = scalar_select %p261, %s21, 0
        %s263 = smul.addr %s260, 2
        %s264 = sadd.s32 %s262, %s263
        %s265 = smul.addr %s264, 8
        %s266 = scalar_lea.vmem %s0, %s265
      $region24: #{set_criterion_forward.1} parent=19 // pred_fallthru
        _
      // Predicated region
      $region25: #{set_criterion_forward.1} parent=19 // pred_check
        %p267 = pneg %p75
      $region26: #{set_criterion_forward.1} parent=19 // pred_check_branch
        %269 = sbr.rel (%p267) target = $region28
      $region27: #{set_criterion_forward.1} parent=19 // pred_region
        %p270 = scmp.lt.s32.totalorder %s20, 2
        %s271 = scalar_select %p270, %s20, 2
        %p272 = scmp.lt.s32.totalorder %s21, 0
        %s273 = scalar_select %p272, %s21, 0
        %s274 = smul.addr %s271, 2
        %s275 = sadd.s32 %s273, %s274
        %s276 = smul.addr %s275, 8
        %s277 = scalar_lea.vmem %s1, %s276
      $region28: #{set_criterion_forward.1} parent=19 // pred_fallthru
        _
      // Predicated region
      $region29: #{set_criterion_forward.1} parent=19 // pred_check
        %p278 = pneg %p103
      $region30: #{set_criterion_forward.1} parent=19 // pred_check_branch
        %280 = sbr.rel (%p278) target = $region32
      $region31: #{set_criterion_forward.1} parent=19 // pred_region
        %p281 = scmp.lt.s32.totalorder %s20, 2
        %s282 = scalar_select %p281, %s20, 2
        %p283 = scmp.lt.s32.totalorder %s21, 0
        %s284 = scalar_select %p283, %s21, 0
        %s285 = smul.addr %s282, 2
        %s286 = sadd.s32 %s284, %s285
        %s287 = smul.addr %s286, 8
        %s288 = scalar_lea.vmem %s2, %s287
      $region32: #{set_criterion_forward.1} parent=19 // pred_fallthru
        _
      // Predicated region
      $region33: #{set_criterion_forward.1} parent=19 // pred_check
        %p289 = pneg %p150
      $region34: #{set_criterion_forward.1} parent=19 // pred_check_branch
        %291 = sbr.rel (%p289) target = $region36
      $region35: #{set_criterion_forward.1} parent=19 // pred_region
        %p292 = scmp.lt.s32.totalorder %s20, 2
        %s293 = scalar_select %p292, %s20, 2
        %s294 = smul.addr %s293, 4
        %s295 = scalar_lea.vmem %s4, %s294
      $region36: #{set_criterion_forward.1} parent=19 // pred_fallthru
        _
      // Predicated region
      $region37: #{set_criterion_forward.1} parent=19 // pred_check
        %p296 = pneg %p176
      $region38: #{set_criterion_forward.1} parent=19 // pred_check_branch
        %298 = sbr.rel (%p296) target = $region40
      $region39: #{set_criterion_forward.1} parent=19 // pred_region
        %p299 = scmp.lt.s32.totalorder %s20, 2
        %s300 = scalar_select %p299, %s20, 2
        %s301 = smul.addr %s300, 4
        %s302 = scalar_lea.vmem %s5, %s301
      $region40: #{set_criterion_forward.1} parent=19 // pred_fallthru
        _
      // Predicated region
      $region41: #{set_criterion_forward.1} parent=19 // pred_check
        %p303 = pneg %p202
      $region42: #{set_criterion_forward.1} parent=19 // pred_check_branch
        %305 = sbr.rel (%p303) target = $region44
      $region43: #{set_criterion_forward.1} parent=19 // pred_region
        %p306 = scmp.lt.s32.totalorder %s20, 2
        %s307 = scalar_select %p306, %s20, 2
        %s308 = scalar_lea.vmem %s6, %s307
      $region44: #{set_criterion_forward.1} parent=19 // pred_fallthru
        _
    $region20: #{set_criterion_forward.1} parent=5 // pred_fallthru
      _
    %p309 = scmp.le.s32.totalorder 1, %s13
    %p310 = scmp.lt.s32.totalorder %s13, 4
    %p311 = pnand %p309, %p310
    %p312 = pneg %p311
    // Predicated region
    $region45: #{set_criterion_forward.1} parent=5 // pred_check
      _
    $region46: #{set_criterion_forward.1} parent=5 // pred_check_branch
      %314 = sbr.rel (%p311) target = $region48
    $region47: #{set_criterion_forward.1} parent=5 // pred_region
      %s315 = ssub.s32 %s13, 1
      %p316 = scmp.lt.s32.totalorder %s22, 2
      %s317 = scalar_select %p316, %s22, 2
      %p318 = scmp.lt.s32.totalorder %s23, 0
      %s319 = scalar_select %p318, %s23, 0
      %s320 = smul.addr %s317, 2
      %s321 = sadd.s32 %s319, %s320
      %s322 = smul.addr %s321, 8
      %s323 = scalar_lea.vmem %s0, %s322
      %p324 = pneg %p53
      %p325 = pneg %p50
      %p326 = scmp.lt.s32.totalorder %s22, 2
      %s327 = scalar_select %p326, %s22, 2
      %p328 = scmp.lt.s32.totalorder %s23, 0
      %s329 = scalar_select %p328, %s23, 0
      %s330 = smul.addr %s327, 2
      %s331 = sadd.s32 %s329, %s330
      %s332 = smul.addr %s331, 8
      %s333 = scalar_lea.vmem %s1, %s332
      %p334 = pneg %p81
      %p335 = pneg %p78
      %p336 = scmp.lt.s32.totalorder %s22, 2
      %s337 = scalar_select %p336, %s22, 2
      %p338 = scmp.lt.s32.totalorder %s23, 0
      %s339 = scalar_select %p338, %s23, 0
      %s340 = smul.addr %s337, 2
      %s341 = sadd.s32 %s339, %s340
      %s342 = smul.addr %s341, 8
      %s343 = scalar_lea.vmem %s2, %s342
      %p344 = pneg %p109
      %p345 = pneg %p106
      %p346 = pneg %p130
      %p347 = pneg %p127
      %p348 = scmp.lt.s32.totalorder %s22, 2
      %s349 = scalar_select %p348, %s22, 2
      %s350 = smul.addr %s349, 4
      %s351 = scalar_lea.vmem %s4, %s350
      %p352 = pneg %p156
      %p353 = pneg %p153
      %p354 = scmp.lt.s32.totalorder %s22, 2
      %s355 = scalar_select %p354, %s22, 2
      %s356 = smul.addr %s355, 4
      %s357 = scalar_lea.vmem %s5, %s356
      %p358 = pneg %p182
      %p359 = pneg %p179
      %p360 = scmp.lt.s32.totalorder %s22, 2
      %s361 = scalar_select %p360, %s22, 2
      %s362 = scalar_lea.vmem %s6, %s361
      %p363 = pneg %p208
      %p364 = pneg %p205
      %p365 = pneg %p234
      %p366 = pneg %p231
      %p367 = scmp.lt.s32.totalorder %s22, 2
      %s368 = scalar_select %p367, %s22, 2
      %s369 = smul.addr %s368, 8
      %s370 = scalar_lea.vmem %s7, %s369
      %p371 = scmp.lt.s32.totalorder %s22, 2
      %s372 = scalar_select %p371, %s22, 2
      %p373 = scmp.lt.s32.totalorder %s23, 0
      %s374 = scalar_select %p373, %s23, 0
      %s375 = smul.addr %s372, 2
      %s376 = sadd.s32 %s374, %s375
      %s377 = smul.addr %s376, 8
      %s378 = scalar_lea.vmem %s0, %s377
      %p379 = scmp.lt.s32.totalorder %s22, 2
      %s380 = scalar_select %p379, %s22, 2
      %p381 = scmp.lt.s32.totalorder %s23, 0
      %s382 = scalar_select %p381, %s23, 0
      %s383 = smul.addr %s380, 2
      %s384 = sadd.s32 %s382, %s383
      %s385 = smul.addr %s384, 8
      %s386 = scalar_lea.vmem %s1, %s385
      %p387 = scmp.lt.s32.totalorder %s22, 2
      %s388 = scalar_select %p387, %s22, 2
      %p389 = scmp.lt.s32.totalorder %s23, 0
      %s390 = scalar_select %p389, %s23, 0
      %s391 = smul.addr %s388, 2
      %s392 = sadd.s32 %s390, %s391
      %s393 = smul.addr %s392, 8
      %s394 = scalar_lea.vmem %s2, %s393
      %p395 = scmp.lt.s32.totalorder %s22, 2
      %s396 = scalar_select %p395, %s22, 2
      %s397 = smul.addr %s396, 4
      %s398 = scalar_lea.vmem %s4, %s397
      %p399 = scmp.lt.s32.totalorder %s22, 2
      %s400 = scalar_select %p399, %s22, 2
      %s401 = smul.addr %s400, 4
      %s402 = scalar_lea.vmem %s5, %s401
      %p403 = scmp.lt.s32.totalorder %s22, 2
      %s404 = scalar_select %p403, %s22, 2
      %s405 = scalar_lea.vmem %s6, %s404
      %p406 = scmp.lt.s32.totalorder %s22, 2
      %s407 = scalar_select %p406, %s22, 2
      %s408 = smul.addr %s407, 8
      %s409 = scalar_lea.vmem %s7, %s408
      %p410 = scmp.eq.s32.totalorder %s23, 0
      // Predicated region
      $region49: #{set_criterion_forward.1} parent=47 // pred_check
        %p411 = pneg %p410
      $region50: #{set_criterion_forward.1} parent=47 // pred_check_branch
        %413 = sbr.rel (%p411) target = $region52
      $region51: #{set_criterion_forward.1} parent=47 // pred_region
        %vm414 = vcmask 58368
        %415 = vst.msk [vmem:[#allocation2] sm:$0x3] %vm414, 0.0
      $region52: #{set_criterion_forward.1} parent=47 // pred_fallthru
        _
      %v416 = vld [vmem:[%s378] sm:$0xff]
      %v417 = vld [vmem:[%s378 + $0x8] sm:$0xff]
      %v418 = vld [vmem:[%s394] sm:$0xff]
      %v419 = vld [vmem:[%s394 + $0x8] sm:$0xff]
      %v420 = vld [vmem:[%s386] sm:$0xff]
      %v421 = vld [vmem:[%s386 + $0x8] sm:$0xff]
      %vm422 = vcmp.ge.s32.totalorder %v420, 0
      %vm423 = vcmp.ge.s32.totalorder %v421, 0
      %v424 = vsel %vm422, 1, 0
      %v425 = vsel %vm423, 1, 0
      %v426 = vcvt.s32.f32 %v424
      %v427 = vcvt.s32.f32 %v425
      %s428 = smul.u32 %s23, 8
      %v429 = vlaneseq
      %v430 = vshrl.u32 %v429, 7
      %v431 = vstv %s428
      %v432 = vadd.s32 %v431, %v430
      %vm433 = vcmp.lt.s32.totalorder %v432, 8
      %v434 = vsel %vm433, 1, 0
      %v435 = vcvt.s32.f32 %v434
      %v436 = vlaneseq
      %v437 = vand.u32 %v436, 127
      %438 = vset.pattern.permute.xlu0 0
      %439 = vperm.xlu0 %438, %v420
      %v440 = vpop.permute.xlu0 %439
      %441 = vset.pattern.permute.xlu0 0
      %442 = vperm.xlu0 %441, %v421
      %v443 = vpop.permute.xlu0 %442
      %vm444 = vcmp.eq.s32.totalorder %v440, %v437
      %vm445 = vcmp.eq.s32.totalorder %v443, %v437
      %v446 = vsel %vm444, 1, 0
      %v447 = vsel %vm445, 1, 0
      %v448 = vcvt.s32.f32 %v446
      %v449 = vcvt.s32.f32 %v447
      %v450 = vand.u32 2147483647, %v416
      %v451 = vand.u32 2147483647, %v417
      %v452 = vsub.f32 0.0, %v450
      %v453 = vsub.f32 0.0, %v451
      %v454 = vmul.f32 %v452, 1.442695
      %v455 = vpow.pop %v454
      %v456 = vmul.f32 %v453, 1.442695
      %v457 = vpow.pop %v456
      %vm458 = vcmp.ge.f32.partialorder %v416, 0.0
      %vm459 = vcmp.ge.f32.partialorder %v417, 0.0
      %v460 = vsel %vm458, 1.0, %v455
      %v461 = vsel %vm459, 1.0, %v457
      %v462 = vadd.f32 %v455, 1.0
      %v463 = vadd.f32 %v457, 1.0
      %v464 = vrcp.pop %v462
      %v465 = vmul.f32 %v462, %v464
      %v466 = vsub.f32 1.0, %v465
      %v467 = vmul.f32 %v464, %v466
      %v468 = vadd.f32 %v464, %v467
      %vm469 = vweird.f32 %v462
      %vm470 = vweird.f32 %v464
      %vm471 = vmor %vm469, %vm470
      %v472 = vsel %vm471, %v464, %v468
      %v473 = vand.u32 2147483647, %v462
      %vm474 = vcmp.eq.f32.partialorder %v473, 8.507059e+37
      %v475 = vand.u32 %v462, 2147483648
      %v476 = vor.u32 1.1754944e-38, %v475
      %v477 = vsel %vm474, %v476, %v472
      %v478 = vmul.f32 %v460, %v477
      %v479 = vrcp.pop %v463
      %v480 = vmul.f32 %v463, %v479
      %v481 = vsub.f32 1.0, %v480
      %v482 = vmul.f32 %v479, %v481
      %v483 = vadd.f32 %v479, %v482
      %vm484 = vweird.f32 %v463
      %vm485 = vweird.f32 %v479
      %vm486 = vmor %vm484, %vm485
      %v487 = vsel %vm486, %v479, %v483
      %v488 = vand.u32 2147483647, %v463
      %vm489 = vcmp.eq.f32.partialorder %v488, 8.507059e+37
      %v490 = vand.u32 %v463, 2147483648
      %v491 = vor.u32 1.1754944e-38, %v490
      %v492 = vsel %vm489, %v491, %v487
      %v493 = vmul.f32 %v461, %v492
      %v494 = vmax.f32 %v416, 0.0
      %v495 = vmax.f32 %v417, 0.0
      %v496 = vmul.f32 %v416, %v448
      %v497 = vmul.f32 %v417, %v449
      %v498 = vsub.f32 %v494, %v496
      %v499 = vsub.f32 %v495, %v497
      %v500 = vlog2.pop %v462
      %v501 = vmul.f32 %v500, 0.6931472
      %v502 = vlog2.pop %v463
      %v503 = vmul.f32 %v502, 0.6931472
      %v504 = vadd.f32 %v498, %v501
      %v505 = vadd.f32 %v499, %v503
      %v506 = vmul.f32 %v478, %v448
      %v507 = vmul.f32 %v493, %v449
      %v508 = vsub.f32 1.0, %v478
      %v509 = vsub.f32 1.0, %v493
      %v510 = vsub.f32 1.0, %v448
      %v511 = vsub.f32 1.0, %v449
      %v512 = vmul.f32 %v508, %v510
      %v513 = vmul.f32 %v509, %v511
      %v514 = vadd.f32 %v506, %v512
      %v515 = vadd.f32 %v507, %v513
      %v516 = vsub.f32 1.0, %v514
      %v517 = vsub.f32 1.0, %v515
      %v518 = vmul.f32 %v504, %v516
      %v519 = vmul.f32 %v505, %v517
      %v520 = vmul.f32 %v518, %v516
      %v521 = vmul.f32 %v519, %v517
      %v522 = vmul.f32 %v448, 0.25
      %v523 = vmul.f32 %v449, 0.25
      %v524 = vmul.f32 %v510, 0.75
      %v525 = vmul.f32 %v511, 0.75
      %v526 = vadd.f32 %v522, %v524
      %v527 = vadd.f32 %v523, %v525
      %v528 = vmul.f32 %v526, %v520
      %v529 = vmul.f32 %v527, %v521
      %vm530 = vcmask 31744
      %v531 = vsel %vm530, %v528, 0.0
      %532 = vadd.xlane.f32.xlu0 %v531
      %v533 = vpop.xlane.xlu0 %532
      %v534 = vsel %vm530, %v529, 0.0
      %535 = vadd.xlane.f32.xlu0 %v534
      %v536 = vpop.xlane.xlu0 %535
      %v537 = vsel %vm530, %v416, -inf
      %538 = vmax.xlane.f32.xlu0 %v537
      %v539 = vpop.xlane.xlu0 %538
      %v540 = vsel %vm530, %v417, -inf
      %541 = vmax.xlane.f32.xlu0 %v540
      %v542 = vpop.xlane.xlu0 %541
      %vm543 = vcmp.eq.f32.partialorder %v416, %v539
      %vm544 = vcmp.eq.f32.partialorder %v417, %v542
      %v545 = vsel %vm543, %v437, 4
      %v546 = vsel %vm544, %v437, 4
      %v547 = vsel %vm530, %v545, 2147483647
      %v548 = vand.u32 %v547, 65535
      %v549 = vshra.s32 %v547, 16
      %v550 = vcvt.s32.f32 %v548
      %v551 = vcvt.s32.f32 %v549
      %552 = vmin.xlane.f32.xlu0 %v551
      %v553 = vpop.xlane.xlu0 %552
      %vm554 = vcmp.eq.f32.partialorder %v551, %v553
      %v555 = vsel %vm554, %v550, inf
      %556 = vmin.xlane.f32.xlu0 %v555
      %v557 = vpop.xlane.xlu0 %556
      %v558 = vcvt.f32.s32 %v557
      %v559 = vcvt.f32.s32 %v553
      %v560 = vshll.u32 %v559, 16
      %v561 = vadd.s32 %v560, %v558
      %v562 = vsel %vm530, %v546, 2147483647
      %v563 = vand.u32 %v562, 65535
      %v564 = vshra.s32 %v562, 16
      %v565 = vcvt.s32.f32 %v563
      %v566 = vcvt.s32.f32 %v564
      %567 = vmin.xlane.f32.xlu0 %v566
      %v568 = vpop.xlane.xlu0 %567
      %vm569 = vcmp.eq.f32.partialorder %v566, %v568
      %v570 = vsel %vm569, %v565, inf
      %571 = vmin.xlane.f32.xlu0 %v570
      %v572 = vpop.xlane.xlu0 %571
      %v573 = vcvt.f32.s32 %v572
      %v574 = vcvt.f32.s32 %v568
      %v575 = vshll.u32 %v574, 16
      %v576 = vadd.s32 %v575, %v573
      %vm577 = vcmp.eq.s32.totalorder %v561, %v420
      %vm578 = vcmp.eq.s32.totalorder %v576, %v421
      %v579 = vsel %vm577, 1, 0
      %v580 = vsel %vm578, 1, 0
      %v581 = vcvt.s32.f32 %v579
      %v582 = vcvt.s32.f32 %v580
      %vm583 = vcmp.ne.s32.totalorder %v561, 3
      %vm584 = vcmp.ne.s32.totalorder %v576, 3
      %v585 = vsel %vm583, 1, 0
      %v586 = vsel %vm584, 1, 0
      %v587 = vcvt.s32.f32 %v585
      %v588 = vcvt.s32.f32 %v586
      %589 = vset.pattern.permute.xlu0 1
      %590 = vperm.xlu0 %589, %v420
      %v591 = vpop.permute.xlu0 %590
      %592 = vset.pattern.permute.xlu0 1
      %593 = vperm.xlu0 %592, %v421
      %v594 = vpop.permute.xlu0 %593
      %vm595 = vcmp.eq.s32.totalorder %v591, %v437
      %vm596 = vcmp.eq.s32.totalorder %v594, %v437
      %v597 = vsel %vm595, 1, 0
      %v598 = vsel %vm596, 1, 0
      %v599 = vcvt.s32.f32 %v597
      %v600 = vcvt.s32.f32 %v598
      %v601 = vand.u32 2147483647, %v418
      %v602 = vand.u32 2147483647, %v419
      %v603 = vsub.f32 0.0, %v601
      %v604 = vsub.f32 0.0, %v602
      %v605 = vmul.f32 %v603, 1.442695
      %v606 = vpow.pop %v605
      %v607 = vmul.f32 %v604, 1.442695
      %v608 = vpow.pop %v607
      %vm609 = vcmp.ge.f32.partialorder %v418, 0.0
      %vm610 = vcmp.ge.f32.partialorder %v419, 0.0
      %v611 = vsel %vm609, 1.0, %v606
      %v612 = vsel %vm610, 1.0, %v608
      %v613 = vadd.f32 %v606, 1.0
      %v614 = vadd.f32 %v608, 1.0
      %v615 = vrcp.pop %v613
      %v616 = vmul.f32 %v613, %v615
      %v617 = vsub.f32 1.0, %v616
      %v618 = vmul.f32 %v615, %v617
      %v619 = vadd.f32 %v615, %v618
      %vm620 = vweird.f32 %v613
      %vm621 = vweird.f32 %v615
      %vm622 = vmor %vm620, %vm621
      %v623 = vsel %vm622, %v615, %v619
      %v624 = vand.u32 2147483647, %v613
      %vm625 = vcmp.eq.f32.partialorder %v624, 8.507059e+37
      %v626 = vand.u32 %v613, 2147483648
      %v627 = vor.u32 1.1754944e-38, %v626
      %v628 = vsel %vm625, %v627, %v623
      %v629 = vmul.f32 %v611, %v628
      %v630 = vrcp.pop %v614
      %v631 = vmul.f32 %v614, %v630
      %v632 = vsub.f32 1.0, %v631
      %v633 = vmul.f32 %v630, %v632
      %v634 = vadd.f32 %v630, %v633
      %vm635 = vweird.f32 %v614
      %vm636 = vweird.f32 %v630
      %vm637 = vmor %vm635, %vm636
      %v638 = vsel %vm637, %v630, %v634
      %v639 = vand.u32 2147483647, %v614
      %vm640 = vcmp.eq.f32.partialorder %v639, 8.507059e+37
      %v641 = vand.u32 %v614, 2147483648
      %v642 = vor.u32 1.1754944e-38, %v641
      %v643 = vsel %vm640, %v642, %v638
      %v644 = vmul.f32 %v612, %v643
      %v645 = vmax.f32 %v418, 0.0
      %v646 = vmax.f32 %v419, 0.0
      %v647 = vmul.f32 %v418, %v599
      %v648 = vmul.f32 %v419, %v600
      %v649 = vsub.f32 %v645, %v647
      %v650 = vsub.f32 %v646, %v648
      %v651 = vlog2.pop %v613
      %v652 = vmul.f32 %v651, 0.6931472
      %v653 = vlog2.pop %v614
      %v654 = vmul.f32 %v653, 0.6931472
      %v655 = vadd.f32 %v649, %v652
      %v656 = vadd.f32 %v650, %v654
      %v657 = vmul.f32 %v629, %v599
      %v658 = vmul.f32 %v644, %v600
      %v659 = vsub.f32 1.0, %v629
      %v660 = vsub.f32 1.0, %v644
      %v661 = vsub.f32 1.0, %v599
      %v662 = vsub.f32 1.0, %v600
      %v663 = vmul.f32 %v659, %v661
      %v664 = vmul.f32 %v660, %v662
      %v665 = vadd.f32 %v657, %v663
      %v666 = vadd.f32 %v658, %v664
      %v667 = vsub.f32 1.0, %v665
      %v668 = vsub.f32 1.0, %v666
      %v669 = vmul.f32 %v655, %v667
      %v670 = vmul.f32 %v656, %v668
      %v671 = vmul.f32 %v669, %v667
      %v672 = vmul.f32 %v670, %v668
      %v673 = vmul.f32 %v599, 0.25
      %v674 = vmul.f32 %v600, 0.25
      %v675 = vmul.f32 %v661, 0.75
      %v676 = vmul.f32 %v662, 0.75
      %v677 = vadd.f32 %v673, %v675
      %v678 = vadd.f32 %v674, %v676
      %v679 = vmul.f32 %v677, %v671
      %v680 = vmul.f32 %v678, %v672
      %vm681 = vcmask 48128
      %v682 = vsel %vm681, %v679, 0.0
      %683 = vadd.xlane.f32.xlu0 %v682
      %v684 = vpop.xlane.xlu0 %683
      %v685 = vsel %vm681, %v680, 0.0
      %686 = vadd.xlane.f32.xlu0 %v685
      %v687 = vpop.xlane.xlu0 %686
      %v688 = vsel %vm681, %v418, -inf
      %689 = vmax.xlane.f32.xlu0 %v688
      %v690 = vpop.xlane.xlu0 %689
      %v691 = vsel %vm681, %v419, -inf
      %692 = vmax.xlane.f32.xlu0 %v691
      %v693 = vpop.xlane.xlu0 %692
      %vm694 = vcmp.eq.f32.partialorder %v418, %v690
      %vm695 = vcmp.eq.f32.partialorder %v419, %v693
      %v696 = vsel %vm694, %v437, 6
      %v697 = vsel %vm695, %v437, 6
      %v698 = vsel %vm681, %v696, 2147483647
      %v699 = vand.u32 %v698, 65535
      %v700 = vshra.s32 %v698, 16
      %v701 = vcvt.s32.f32 %v699
      %v702 = vcvt.s32.f32 %v700
      %703 = vmin.xlane.f32.xlu0 %v702
      %v704 = vpop.xlane.xlu0 %703
      %vm705 = vcmp.eq.f32.partialorder %v702, %v704
      %v706 = vsel %vm705, %v701, inf
      %707 = vmin.xlane.f32.xlu0 %v706
      %v708 = vpop.xlane.xlu0 %707
      %v709 = vcvt.f32.s32 %v708
      %v710 = vcvt.f32.s32 %v704
      %v711 = vshll.u32 %v710, 16
      %v712 = vadd.s32 %v711, %v709
      %v713 = vsel %vm681, %v697, 2147483647
      %v714 = vand.u32 %v713, 65535
      %v715 = vshra.s32 %v713, 16
      %v716 = vcvt.s32.f32 %v714
      %v717 = vcvt.s32.f32 %v715
      %718 = vmin.xlane.f32.xlu0 %v717
      %v719 = vpop.xlane.xlu0 %718
      %vm720 = vcmp.eq.f32.partialorder %v717, %v719
      %v721 = vsel %vm720, %v716, inf
      %722 = vmin.xlane.f32.xlu0 %v721
      %v723 = vpop.xlane.xlu0 %722
      %v724 = vcvt.f32.s32 %v723
      %v725 = vcvt.f32.s32 %v719
      %v726 = vshll.u32 %v725, 16
      %v727 = vadd.s32 %v726, %v724
      %vm728 = vcmp.eq.s32.totalorder %v712, %v420
      %vm729 = vcmp.eq.s32.totalorder %v727, %v421
      %v730 = vsel %vm728, 1, 0
      %v731 = vsel %vm729, 1, 0
      %v732 = vcvt.s32.f32 %v730
      %v733 = vcvt.s32.f32 %v731
      %v734 = vmul.f32 %v732, %v426
      %v735 = vmul.f32 %v733, %v427
      %vm736 = vcmp.eq.s32.totalorder %v437, 0
      %v737 = vsel %vm736, %v533, 0.0
      %v738 = vsel %vm736, %v536, 0.0
      %vm739 = vcmp.eq.s32.totalorder %v437, 1
      %741 = vset.pattern.permute.xlu0 0
      %742 = vperm.xlu0 %741, %v581
      %v743 = vpop.permute.xlu0 %742
      %746 = vset.pattern.permute.xlu0 0
      %747 = vperm.xlu0 %746, %v582
      %v748 = vpop.permute.xlu0 %747
      %v750 = vsel %vm739, %v743, %v737
      %v751 = vsel %vm739, %v748, %v738
      %vm752 = vcmp.eq.s32.totalorder %v437, 2
      %v753 = vmul.f32 %v684, %v426
      %v754 = vmul.f32 %v687, %v427
      %756 = vset.pattern.permute.xlu0 1
      %757 = vperm.xlu0 %756, %v753
      %v758 = vpop.permute.xlu0 %757
      %761 = vset.pattern.permute.xlu0 1
      %762 = vperm.xlu0 %761, %v754
      %v763 = vpop.permute.xlu0 %762
      %v765 = vsel %vm752, %v758, %v750
      %v766 = vsel %vm752, %v763, %v751
      %vm767 = vcmp.eq.s32.totalorder %v437, 3
      %769 = vset.pattern.permute.xlu0 1
      %770 = vperm.xlu0 %769, %v426
      %v771 = vpop.permute.xlu0 %770
      %774 = vset.pattern.permute.xlu0 1
      %775 = vperm.xlu0 %774, %v427
      %v776 = vpop.permute.xlu0 %775
      %v778 = vsel %vm767, %v771, %v765
      %v779 = vsel %vm767, %v776, %v766
      %vm780 = vcmp.eq.s32.totalorder %v437, 4
      %782 = vset.pattern.permute.xlu0 1
      %783 = vperm.xlu0 %782, %v734
      %v784 = vpop.permute.xlu0 %783
      %787 = vset.pattern.permute.xlu0 1
      %788 = vperm.xlu0 %787, %v735
      %v789 = vpop.permute.xlu0 %788
      %v791 = vsel %vm780, %v784, %v778
      %v792 = vsel %vm780, %v789, %v779
      %vm793 = vcmp.eq.s32.totalorder %v437, 5
      %v794 = vsel %vm793, %v587, %v791
      %v795 = vsel %vm793, %v588, %v792
      %v796 = vld [vmem:[#allocation2] sm:$0x3]
      %v797 = vmul.f32 %v794, %v435
      %v798 = vmul.f32 %v795, %v435
      %vm799 = vcmask 64512
      %v800 = vsel %vm799, %v797, 0.0
      %v801 = vrot.slane %v800, 4
      %v802 = vadd.f32 %v800, %v801
      %v803 = vrot.slane %v802, 2
      %v804 = vadd.f32 %v802, %v803
      %v805 = vrot.slane %v804, 1
      %v806 = vadd.f32 %v804, %v805
      %v807 = vsel %vm799, %v798, 0.0
      %v808 = vrot.slane %v807, 4
      %v809 = vadd.f32 %v807, %v808
      %v810 = vrot.slane %v809, 2
      %v811 = vadd.f32 %v809, %v810
      %v812 = vrot.slane %v811, 1
      %v813 = vadd.f32 %v811, %v812
      %vm816 = vcmask 1041409
      %v817 = vsel %vm816, %v813, %v806
      %v819 = vadd.f32 %v796, %v817
      %vm820 = vcmask 58368
      %821 = vst.msk [vmem:[#allocation2] sm:$0x3] %vm820, %v819
      // Predicated region
      $region53: #{set_criterion_forward.1} parent=47 // pred_check
        %p822 = pneg %p410
      $region54: #{set_criterion_forward.1} parent=47 // pred_check_branch
        %824 = sbr.rel (%p822) target = $region56
      $region55: #{set_criterion_forward.1} parent=47 // pred_region
        %v825 = vld [vmem:[%s3] sm:$0x3]
        %v826 = vld [vmem:[#allocation2] sm:$0x3]
        %vm827 = vcmask 1024
        %v828 = vsel %vm827, %v825, 0.0
        %v829 = vrot.slane %v828, 4
        %v830 = vadd.f32 %v828, %v829
        %v831 = vrot.slane %v830, 2
        %v832 = vadd.f32 %v830, %v831
        %v833 = vrot.slane %v832, 1
        %v834 = vadd.f32 %v832, %v833
        %v835 = vmax.f32 %v834, 1.0
        %v836 = vsel %vm820, %v826, 0.0
        %v837 = vrot.slane %v836, 4
        %v838 = vadd.f32 %v836, %v837
        %v839 = vrot.slane %v838, 2
        %v840 = vadd.f32 %v838, %v839
        %v841 = vrot.slane %v840, 1
        %v842 = vadd.f32 %v840, %v841
        %v843 = vmax.f32 %v842, 1.0
        %845 = vrot.lane.b32.xlu0 %v825, 5
        %v846 = vpop.permute.xlu0 %845
        %v848 = vsub.f32 %v826, %v846
        %v849 = vand.u32 2147483647, %v848
        %vm850 = vcmask 42024
        %v851 = vsel %vm850, %v849, 0.0
        %v852 = vrot.slane %v851, 4
        %v853 = vadd.f32 %v851, %v852
        %v854 = vrot.slane %v853, 2
        %v855 = vadd.f32 %v853, %v854
        %v856 = vrot.slane %v855, 1
        %v857 = vadd.f32 %v855, %v856
        %v858 = vrcp.pop 2.0
        %v859 = vmul.f32 2.0, %v858
        %v860 = vsub.f32 1.0, %v859
        %v861 = vmul.f32 %v858, %v860
        %v862 = vadd.f32 %v858, %v861
        %vm863 = vweird.f32 %v858
        %v864 = vsel %vm863, %v858, %v862
        %v865 = vmul.f32 %v857, %v864
        %v866 = vld [vmem:[%s398] sm:$0xf]
        %v867 = vld [vmem:[%s402] sm:$0xf]
        %v868 = vld [vmem:[%s405] sm:$0x1]
        %v869 = vsub.f32 %v866, %v867
        %v870 = vand.u32 2147483647, %v869
        %v872 = vperm.slane %v868, 0
        %v874 = vmul.f32 %v870, %v872
        %vm875 = vcmask 1043456
        %v876 = vsel %vm875, %v874, 0.0
        %877 = vadd.xlane.f32.xlu0 %v876
        %v878 = vpop.xlane.xlu0 %877
        %v879 = vrot.slane %v878, 4
        %v880 = vadd.f32 %v878, %v879
        %v881 = vrot.slane %v880, 2
        %v882 = vadd.f32 %v880, %v881
        %v883 = vrot.slane %v882, 1
        %v884 = vadd.f32 %v882, %v883
        %s885 = vtos %v884
        %v886 = vstv %s885
        %v887 = vmul.f32 %v866, 0.5
        %v889 = vrot.slane %v887, 2
        %v891 = vsub.f32 %v866, %v889
        %v892 = vadd.f32 %v866, %v889
        %v893 = vmul.f32 %v867, 0.5
        %v895 = vrot.slane %v893, 2
        %v897 = vsub.f32 %v867, %v895
        %v898 = vadd.f32 %v867, %v895
        %v899 = vsub.f32 %v892, %v891
        %v901 = vrot.slane %v899, 1
        %v903 = vmul.f32 %v899, %v901
        %v904 = vsub.f32 %v898, %v897
        %v906 = vrot.slane %v904, 1
        %v908 = vmul.f32 %v904, %v906
        %v909 = vmin.f32 %v892, %v898
        %v910 = vmax.f32 %v891, %v897
        %v911 = vsub.f32 %v909, %v910
        %v912 = vmax.f32 %v911, 0.0
        %v914 = vrot.slane %v912, 1
        %v916 = vmul.f32 %v912, %v914
        %v917 = vadd.f32 %v903, %v908
        %v918 = vsub.f32 %v917, %v916
        %v919 = vmax.f32 %v918, 1e-07
        %v920 = vrcp.pop %v919
        %v921 = vmul.f32 %v919, %v920
        %v922 = vsub.f32 1.0, %v921
        %v923 = vmul.f32 %v920, %v922
        %v924 = vadd.f32 %v920, %v923
        %vm925 = vweird.f32 %v919
        %vm926 = vweird.f32 %v920
        %vm927 = vmor %vm925, %vm926
        %v928 = vsel %vm927, %v920, %v924
        %v929 = vand.u32 2147483647, %v919
        %vm930 = vcmp.eq.f32.partialorder %v929, 8.507059e+37
        %v931 = vand.u32 %v919, 2147483648
        %v932 = vor.u32 1.1754944e-38, %v931
        %v933 = vsel %vm930, %v932, %v928
        %v934 = vmul.f32 %v916, %v933
        %v935 = vmax.f32 %v892, %v898
        %v936 = vmin.f32 %v891, %v897
        %v937 = vsub.f32 %v935, %v936
        %v939 = vrot.slane %v937, 1
        %v941 = vmul.f32 %v937, %v939
        %v942 = vsub.f32 %v941, %v918
        %v943 = vmax.f32 %v941, 1e-07
        %v944 = vrcp.pop %v943
        %v945 = vmul.f32 %v943, %v944
        %v946 = vsub.f32 1.0, %v945
        %v947 = vmul.f32 %v944, %v946
        %v948 = vadd.f32 %v944, %v947
        %vm949 = vweird.f32 %v943
        %vm950 = vweird.f32 %v944
        %vm951 = vmor %vm949, %vm950
        %v952 = vsel %vm951, %v944, %v948
        %v953 = vand.u32 2147483647, %v943
        %vm954 = vcmp.eq.f32.partialorder %v953, 8.507059e+37
        %v955 = vand.u32 %v943, 2147483648
        %v956 = vor.u32 1.1754944e-38, %v955
        %v957 = vsel %vm954, %v956, %v952
        %v958 = vmul.f32 %v942, %v957
        %v959 = vsub.f32 %v934, %v958
        %v960 = vsub.f32 1.0, %v959
        %v961 = vmul.f32 %v960, %v868
        %vm962 = vcmask 1040384
        %v963 = vsel %vm962, %v961, 0.0
        %964 = vadd.xlane.f32.xlu0 %v963
        %v965 = vpop.xlane.xlu0 %964
        %v966 = vrot.slane %v965, 4
        %v967 = vadd.f32 %v965, %v966
        %v968 = vrot.slane %v967, 2
        %v969 = vadd.f32 %v967, %v968
        %v970 = vrot.slane %v969, 1
        %v971 = vadd.f32 %v969, %v970
        %s972 = vtos %v971
        %v973 = vstv %s972
        %v974 = vrcp.pop %v835
        %v975 = vmul.f32 %v835, %v974
        %v976 = vsub.f32 1.0, %v975
        %v977 = vmul.f32 %v974, %v976
        %v978 = vadd.f32 %v974, %v977
        %vm979 = vweird.f32 %v835
        %vm980 = vweird.f32 %v974
        %vm981 = vmor %vm979, %vm980
        %v982 = vsel %vm981, %v974, %v978
        %v983 = vand.u32 2147483647, %v835
        %vm984 = vcmp.eq.f32.partialorder %v983, 8.507059e+37
        %v985 = vand.u32 %v835, 2147483648
        %v986 = vor.u32 1.1754944e-38, %v985
        %v987 = vsel %vm984, %v986, %v982
        %v988 = vmul.f32 %v842, %v987
        %v989 = vmul.f32 %v842, 100.0
        %991 = vrot.lane.b32.xlu0 %v835, 1
        %v992 = vpop.permute.xlu0 %991
        %v994 = vrcp.pop %v992
        %v995 = vmul.f32 %v992, %v994
        %v996 = vsub.f32 1.0, %v995
        %v997 = vmul.f32 %v994, %v996
        %v998 = vadd.f32 %v994, %v997
        %vm999 = vweird.f32 %v992
        %vm1000 = vweird.f32 %v994
        %vm1001 = vmor %vm999, %vm1000
        %v1002 = vsel %vm1001, %v994, %v998
        %v1003 = vand.u32 2147483647, %v992
        %vm1004 = vcmp.eq.f32.partialorder %v1003, 8.507059e+37
        %v1005 = vand.u32 %v992, 2147483648
        %v1006 = vor.u32 1.1754944e-38, %v1005
        %v1007 = vsel %vm1004, %v1006, %v1002
        %v1008 = vmul.f32 %v989, %v1007
        %v1009 = vsub.f32 100.0, %v1008
        %1011 = vrot.lane.b32.xlu0 %v843, 127
        %v1012 = vpop.permute.xlu0 %1011
        %v1014 = vrcp.pop %v1012
        %v1015 = vmul.f32 %v1012, %v1014
        %v1016 = vsub.f32 1.0, %v1015
        %v1017 = vmul.f32 %v1014, %v1016
        %v1018 = vadd.f32 %v1014, %v1017
        %vm1019 = vweird.f32 %v1012
        %vm1020 = vweird.f32 %v1014
        %vm1021 = vmor %vm1019, %vm1020
        %v1022 = vsel %vm1021, %v1014, %v1018
        %v1023 = vand.u32 2147483647, %v1012
        %vm1024 = vcmp.eq.f32.partialorder %v1023, 8.507059e+37
        %v1025 = vand.u32 %v1012, 2147483648
        %v1026 = vor.u32 1.1754944e-38, %v1025
        %v1027 = vsel %vm1024, %v1026, %v1022
        %v1028 = vmul.f32 %v842, %v1027
        %1029 = vrot.lane.b32.xlu0 %v843, 1
        %v1030 = vpop.permute.xlu0 %1029
        %v1032 = vrcp.pop %v1030
        %v1033 = vmul.f32 %v1030, %v1032
        %v1034 = vsub.f32 1.0, %v1033
        %v1035 = vmul.f32 %v1032, %v1034
        %v1036 = vadd.f32 %v1032, %v1035
        %vm1037 = vweird.f32 %v1030
        %vm1038 = vweird.f32 %v1032
        %vm1039 = vmor %vm1037, %vm1038
        %v1040 = vsel %vm1039, %v1032, %v1036
        %v1041 = vand.u32 2147483647, %v1030
        %vm1042 = vcmp.eq.f32.partialorder %v1041, 8.507059e+37
        %v1043 = vand.u32 %v1030, 2147483648
        %v1044 = vor.u32 1.1754944e-38, %v1043
        %v1045 = vsel %vm1042, %v1044, %v1040
        %v1046 = vmul.f32 %v989, %v1045
        %v1047 = vsub.f32 100.0, %v1046
        %v1048 = vmul.f32 %v886, %v987
        %v1049 = vmul.f32 %v973, %v987
        %1051 = vset.pattern.permute.xlu0 0
        %1052 = vperm.xlu0 %1051, %v988
        %v1053 = vpop.permute.xlu0 %1052
        %v1055 = vsel %vm736, %v1053, 0.0
        %1057 = vrot.lane.b32.xlu0 %v1009, 127
        %v1058 = vpop.permute.xlu0 %1057
        %s1059 = vtos %v1058
        %v1060 = vstv %s1059
        %v1062 = vsel %vm739, %v1060, %v1055
        %1064 = vset.pattern.permute.xlu0 5
        %1065 = vperm.xlu0 %1064, %v865
        %v1066 = vpop.permute.xlu0 %1065
        %v1068 = vsel %vm752, %v1066, %v1062
        %1070 = vrot.lane.b32.xlu0 %v1028, 126
        %v1071 = vpop.permute.xlu0 %1070
        %s1072 = vtos %v1071
        %v1073 = vstv %s1072
        %v1075 = vsel %vm767, %v1073, %v1068
        %1077 = vrot.lane.b32.xlu0 %v1047, 124
        %v1078 = vpop.permute.xlu0 %1077
        %s1079 = vtos %v1078
        %v1080 = vstv %s1079
        %v1082 = vsel %vm780, %v1080, %v1075
        %1084 = vset.pattern.permute.xlu0 0
        %1085 = vperm.xlu0 %1084, %v1048
        %v1086 = vpop.permute.xlu0 %1085
        %v1088 = vsel %vm793, %v1086, %v1082
        %vm1089 = vcmp.eq.s32.totalorder %v437, 6
        %1091 = vset.pattern.permute.xlu0 0
        %1092 = vperm.xlu0 %1091, %v1049
        %v1093 = vpop.permute.xlu0 %1092
        %v1095 = vsel %vm1089, %v1093, %v1088
        %1096 = vst [vmem:[%s409] sm:$0xff] %v1095
      $region56: #{set_criterion_forward.1} parent=47 // pred_fallthru
        _
      %p1097 = scmp.lt.s32.totalorder %s22, 2
      %s1098 = scalar_select %p1097, %s22, 2
      %s1099 = smul.addr %s1098, 8
      %s1100 = scalar_lea.vmem %s7, %s1099
      // Predicated region
      $region57: #{set_criterion_forward.1} parent=47 // pred_check
        %p1101 = pneg %p231
      $region58: #{set_criterion_forward.1} parent=47 // pred_check_branch
        %1103 = sbr.rel (%p1101) target = $region60
      $region59: #{set_criterion_forward.1} parent=47 // pred_region
        _
      $region60: #{set_criterion_forward.1} parent=47 // pred_fallthru
        _
    $region48: #{set_criterion_forward.1} parent=5 // pred_fallthru
      _
    %p1104 = scmp.le.s32.totalorder 2, %s13
    // Predicated region
    $region61: #{set_criterion_forward.1} parent=5 // pred_check
      %p1105 = pneg %p1104
    $region62: #{set_criterion_forward.1} parent=5 // pred_check_branch
      %1107 = sbr.rel (%p1105) target = $region64
    $region63: #{set_criterion_forward.1} parent=5 // pred_region
      %s1108 = ssub.s32 %s13, 2
      // Predicated region
      $region65: #{set_criterion_forward.1} parent=63 // pred_check
        %p1109 = pneg %p237
      $region66: #{set_criterion_forward.1} parent=63 // pred_check_branch
        %1111 = sbr.rel (%p1109) target = $region68
      $region67: #{set_criterion_forward.1} parent=63 // pred_region
        %p1112 = scmp.lt.s32.totalorder %s24, 2
        %s1113 = scalar_select %p1112, %s24, 2
        %s1114 = smul.addr %s1113, 8
        %s1115 = scalar_lea.vmem %s7, %s1114
      $region68: #{set_criterion_forward.1} parent=63 // pred_fallthru
        _
    $region64: #{set_criterion_forward.1} parent=5 // pred_fallthru
      _
  $region6: #{set_criterion_forward.1} parent=0 // loop_footer
    %s17 = sadd.s32 1, %s13
  $region7: #{set_criterion_forward.1} parent=0 // loop_footer_branch
    %12 = sbr.rel target = $region3
  $region8: #{set_criterion_forward.1} parent=0 // loop_exit
    _

</llo_original>
